<compile_context>
chip_gen: v7x
topology: tpu7x:2x2x1
jax: 0.10.0
libtpu: 0.0.40
codegen_flags: <defaults>
</compile_context>

<pallas_src>
import math

import jax
import jax.numpy as jnp
from jax.experimental import pallas as pl
from jax.experimental.pallas import tpu as pltpu


_SQRT_2_OVER_PI = 0.7978845608028654


def _gelu_tanh(x):
    return 0.5 * x * (1.0 + jnp.tanh(_SQRT_2_OVER_PI * (x + 0.044715 * x * x * x)))


def _conv_taps(x, w_ref, b_ref, dil):
    """Dilated causal conv on a (C_in, L_in) slab (time on lanes).

    w_ref: (k, C_out, C_in) VMEM ref, b_ref: (C_out, 1) VMEM ref.
    Returns (C_out, L_in - dil*(k-1)) f32.
    """
    k = w_ref.shape[0]
    L = x.shape[1] - dil * (k - 1)
    acc = jnp.dot(w_ref[0], x[:, 0:L], preferred_element_type=jnp.float32)
    for j in range(1, k):
        acc = acc + jnp.dot(
            w_ref[j], x[:, j * dil:j * dil + L],
            preferred_element_type=jnp.float32)
    return acc + b_ref[...]


def _make_kernel(dils):
    dA, dB, dC, dD, dE = dils

    def kernel(x_ref, w1, b1, w2, b2, w3, b3, w4, b4, w5, b5, o_ref):
        # x_ref: (1, in_dim, T + p0) -- one batch element, already norm-foldable
        x = x_ref[0]
        h = _gelu_tanh(_conv_taps(x, w1, b1, dA))
        h = _gelu_tanh(_conv_taps(h, w2, b2, dB))
        h = _gelu_tanh(_conv_taps(h, w3, b3, dC))
        h = _gelu_tanh(_conv_taps(h, w4, b4, dD))
        y = _conv_taps(h, w5, b5, dE)              # (out_dim, T)
        o_ref[0] = y.astype(o_ref.dtype)

    return kernel


def _fold_params(params, eps=1e-5):
    """Fold eval-mode BatchNorm and the input normalisation into conv weights."""
    folded = []
    for i in range(1, 5):
        W = params[f"W{i}"]
        b = params[f"b{i}"]
        s = params[f"bn{i}_gamma"] / jnp.sqrt(params[f"bn{i}_var"] + eps)
        Wf = W * s[:, None, None]
        bf = (b - params[f"bn{i}_mean"]) * s + params[f"bn{i}_beta"]
        folded.append((Wf, bf))
    # Fold (x - mean_u) / std_u into the first conv (replication pad commutes
    # with the per-channel affine norm, so padding the raw input is equivalent).
    W1, b1 = folded[0]
    inv_std = 1.0 / params["std_u"]
    W1n = W1 * inv_std[None, :, None]
    b1n = b1 - jnp.einsum("ocj,c->o", W1, params["mean_u"] * inv_std)
    folded[0] = (W1n, b1n)
    folded.append((params["W5"], params["b5"]))
    return folded


def imunet_forward(us, params, ks, ds):
    """us: (B, T, in_dim) float32. Returns (B, T, out_dim) float32."""
    B, T, C = us.shape
    k0, k1, k2, k3 = ks
    d0, d1, d2 = ds
    dils = (1, d0, d0 * d1, d0 * d1 * d2, 1)
    p0 = (k0 - 1) + d0 * (k1 - 1) + d0 * d1 * (k2 - 1) + d0 * d1 * d2 * (k3 - 1)
    Tp = T + p0

    folded = _fold_params(params)
    kern_args = []
    for W, b in folded:
        kern_args.append(jnp.transpose(W, (2, 0, 1)).astype(jnp.float32))   # (k, c_out, c_in)
        kern_args.append(b.reshape(-1, 1).astype(jnp.float32))              # (c_out, 1)
    out_dim = folded[-1][0].shape[0]

    # Channels -> sublanes, time -> lanes, plus causal replication pad; a single
    # cheap XLA pass over the (small) raw input before the fused kernel.
    u = jnp.transpose(us.astype(jnp.float32), (0, 2, 1))                     # (B, C, T)
    u = jnp.concatenate(
        [jnp.broadcast_to(u[:, :, :1], (B, C, p0)), u], axis=2)              # (B, C, Tp)

    def _const_map(ndim):
        return lambda b: (0,) * ndim

    in_specs = [pl.BlockSpec((1, C, Tp), lambda b: (b, 0, 0))]
    for arr in kern_args:
        # Full-extent blocks with constant index maps: weights stay VMEM-resident.
        in_specs.append(pl.BlockSpec(arr.shape, _const_map(arr.ndim)))

    out = pl.pallas_call(
        _make_kernel(dils),
        out_shape=jax.ShapeDtypeStruct((B, out_dim, T), jnp.float32),
        grid=(B,),
        in_specs=in_specs,
        out_specs=pl.BlockSpec((1, out_dim, T), lambda b: (b, 0, 0)),
        compiler_params=pltpu.CompilerParams(
            dimension_semantics=("parallel",)),
    )(u, *kern_args)

    return jnp.transpose(out, (0, 2, 1))                                     # (B, T, out_dim)


def _reference_forward(us, params, ks, ds, eps=1e-5):
    """Plain-JAX reference implementing the unfused, unfolded eval forward."""
    k0, k1, k2, k3 = ks
    d0, d1, d2 = ds
    p0 = (k0 - 1) + d0 * (k1 - 1) + d0 * d1 * (k2 - 1) + d0 * d1 * d2 * (k3 - 1)
    B, T, C = us.shape

    def conv(x, W, b, d):
        k = W.shape[2]
        L = x.shape[2] - d * (k - 1)
        acc = jnp.zeros((x.shape[0], W.shape[0], L), jnp.float32)
        for j in range(k):
            acc = acc + jnp.einsum("oc,bcl->bol", W[:, :, j],
                                   x[:, :, j * d:j * d + L])
        return acc + b[None, :, None]

    def bn(x, i):
        g = params[f"bn{i}_gamma"][None, :, None]
        beta = params[f"bn{i}_beta"][None, :, None]
        rm = params[f"bn{i}_mean"][None, :, None]
        rv = params[f"bn{i}_var"][None, :, None]
        return (x - rm) / jnp.sqrt(rv + eps) * g + beta

    u = (us - params["mean_u"]) / params["std_u"]
    u = jnp.transpose(u, (0, 2, 1))
    u = jnp.concatenate([jnp.broadcast_to(u[:, :, :1], (B, C, p0)), u], axis=2)

    h = _gelu_tanh(bn(conv(u, params["W1"], params["b1"], 1), 1))
    h = _gelu_tanh(bn(conv(h, params["W2"], params["b2"], d0), 2))
    h = _gelu_tanh(bn(conv(h, params["W3"], params["b3"], d0 * d1), 3))
    h = _gelu_tanh(bn(conv(h, params["W4"], params["b4"], d0 * d1 * d2), 4))
    y = conv(h, params["W5"], params["b5"], 1)
    return jnp.transpose(y, (0, 2, 1))


def init_imunet_params(key, in_dim, out_dim, c0, ks):
    c1, c2, c3 = 2 * c0, 4 * c0, 8 * c0
    layers = [(c0, in_dim, ks[0]), (c1, c0, ks[1]), (c2, c1, ks[2]),
              (c3, c2, ks[3]), (out_dim, c3, 1)]
    keys = jax.random.split(key, 32)
    ki = 0
    params = {}
    for i, (co, ci, k) in enumerate(layers, start=1):
        scale = 1.0 / math.sqrt(ci * k)
        params[f"W{i}"] = scale * jax.random.normal(keys[ki], (co, ci, k), jnp.float32); ki += 1
        params[f"b{i}"] = 0.1 * jax.random.normal(keys[ki], (co,), jnp.float32); ki += 1
        if i <= 4:
            params[f"bn{i}_gamma"] = 1.0 + 0.1 * jax.random.normal(keys[ki], (co,), jnp.float32); ki += 1
            params[f"bn{i}_beta"] = 0.1 * jax.random.normal(keys[ki], (co,), jnp.float32); ki += 1
            params[f"bn{i}_mean"] = 0.1 * jax.random.normal(keys[ki], (co,), jnp.float32); ki += 1
            params[f"bn{i}_var"] = 0.5 + jax.random.uniform(keys[ki], (co,), jnp.float32); ki += 1
    params["mean_u"] = 0.1 * jax.random.normal(keys[ki], (in_dim,), jnp.float32); ki += 1
    params["std_u"] = 0.8 + 0.4 * jax.random.uniform(keys[ki], (in_dim,), jnp.float32); ki += 1
    return params


if __name__ == "__main__":
    # Small IMUNet-like config: in_dim=6 (IMU), out_dim=16, c0=8 -> channels 8/16/32/64,
    # ks=(3,3,3,3), ds=(2,2,2)  =>  p0 = 30, receptive field 31.  B=2, T=64.
    in_dim, out_dim, c0 = 6, 16, 8
    ks = (3, 3, 3, 3)
    ds = (2, 2, 2)
    B, T = 2, 64

    key = jax.random.PRNGKey(0)
    k_params, k_input = jax.random.split(key)
    params = init_imunet_params(k_params, in_dim, out_dim, c0, ks)
    us = jax.random.normal(k_input, (B, T, in_dim), jnp.float32)

    out = imunet_forward(us, params, ks, ds)
    out = jax.block_until_ready(out)

    ref = _reference_forward(us, params, ks, ds)
    assert out.shape == (B, T, out_dim), out.shape
    assert jnp.allclose(out, ref, atol=3e-2, rtol=3e-2), float(
        jnp.max(jnp.abs(out - ref)))

    print("KERNEL_OK")
</pallas_src>

<mosaic_0001>
module attributes {stable_mosaic.version = 11 : i64} {
  func.func @kernel(%arg0: i32, %arg1: memref<1x6x94xf32, #tpu.memory_space<vmem>>, %arg2: memref<3x8x6xf32, #tpu.memory_space<vmem>>, %arg3: memref<8x1xf32, #tpu.memory_space<vmem>>, %arg4: memref<3x16x8xf32, #tpu.memory_space<vmem>>, %arg5: memref<16x1xf32, #tpu.memory_space<vmem>>, %arg6: memref<3x32x16xf32, #tpu.memory_space<vmem>>, %arg7: memref<32x1xf32, #tpu.memory_space<vmem>>, %arg8: memref<3x64x32xf32, #tpu.memory_space<vmem>>, %arg9: memref<64x1xf32, #tpu.memory_space<vmem>>, %arg10: memref<1x16x64xf32, #tpu.memory_space<vmem>>, %arg11: memref<16x1xf32, #tpu.memory_space<vmem>>, %arg12: memref<1x16x64xf32, #tpu.memory_space<vmem>>) attributes {dimension_semantics = [#tpu.dimension_semantics<parallel>], iteration_bounds = array<i64: 2>, scalar_prefetch = 0 : i64, scratch_operands = 0 : i64, tpu.core_type = #tpu.core_type<tc>, window_params = [{transform_indices = @transform_0, window_bounds = array<i64: 1, 6, 94>}, {pipeline_mode = #tpu.pipeline_mode<synchronous>, transform_indices = @transform_1, window_bounds = array<i64: 3, 8, 6>}, {pipeline_mode = #tpu.pipeline_mode<synchronous>, transform_indices = @transform_2, window_bounds = array<i64: 8, 1>}, {pipeline_mode = #tpu.pipeline_mode<synchronous>, transform_indices = @transform_3, window_bounds = array<i64: 3, 16, 8>}, {pipeline_mode = #tpu.pipeline_mode<synchronous>, transform_indices = @transform_4, window_bounds = array<i64: 16, 1>}, {pipeline_mode = #tpu.pipeline_mode<synchronous>, transform_indices = @transform_5, window_bounds = array<i64: 3, 32, 16>}, {pipeline_mode = #tpu.pipeline_mode<synchronous>, transform_indices = @transform_6, window_bounds = array<i64: 32, 1>}, {pipeline_mode = #tpu.pipeline_mode<synchronous>, transform_indices = @transform_7, window_bounds = array<i64: 3, 64, 32>}, {pipeline_mode = #tpu.pipeline_mode<synchronous>, transform_indices = @transform_8, window_bounds = array<i64: 64, 1>}, {pipeline_mode = #tpu.pipeline_mode<synchronous>, transform_indices = @transform_9, window_bounds = array<i64: 1, 16, 64>}, {pipeline_mode = #tpu.pipeline_mode<synchronous>, transform_indices = @transform_10, window_bounds = array<i64: 16, 1>}, {transform_indices = @transform_11, window_bounds = array<i64: 1, 16, 64>}]} {
    %c0 = arith.constant 0 : index
    %c0_0 = arith.constant 0 : index
    %c0_1 = arith.constant 0 : index
    %0 = vector.load %arg1[%c0, %c0_0, %c0_1] : memref<1x6x94xf32, #tpu.memory_space<vmem>>, vector<1x6x94xf32>
    %1 = vector.shape_cast %0 : vector<1x6x94xf32> to vector<6x94xf32>
    %c0_2 = arith.constant 0 : index
    %c0_3 = arith.constant 0 : index
    %c0_4 = arith.constant 0 : index
    %2 = vector.load %arg2[%c0_2, %c0_3, %c0_4] : memref<3x8x6xf32, #tpu.memory_space<vmem>>, vector<1x8x6xf32>
    %3 = vector.shape_cast %2 : vector<1x8x6xf32> to vector<8x6xf32>
    %4 = vector.extract_strided_slice %1 {offsets = [0, 0], sizes = [6, 92], strides = [1, 1]} : vector<6x94xf32> to vector<6x92xf32>
    %cst = arith.constant dense<0.000000e+00> : vector<8x92xf32>
    %5 = tpu.matmul %3, %4, %cst {dimension_numbers = #tpu.dot_dimension_numbers<[1], [0], [0], [1], [0, 0, 1, 1], [], []>} : vector<8x6xf32>, vector<6x92xf32>, vector<8x92xf32> -> vector<8x92xf32>
    %c1 = arith.constant 1 : index
    %c0_5 = arith.constant 0 : index
    %c0_6 = arith.constant 0 : index
    %6 = vector.load %arg2[%c1, %c0_5, %c0_6] : memref<3x8x6xf32, #tpu.memory_space<vmem>>, vector<1x8x6xf32>
    %7 = vector.shape_cast %6 : vector<1x8x6xf32> to vector<8x6xf32>
    %8 = vector.extract_strided_slice %1 {offsets = [0, 1], sizes = [6, 92], strides = [1, 1]} : vector<6x94xf32> to vector<6x92xf32>
    %cst_7 = arith.constant dense<0.000000e+00> : vector<8x92xf32>
    %9 = tpu.matmul %7, %8, %cst_7 {dimension_numbers = #tpu.dot_dimension_numbers<[1], [0], [0], [1], [0, 0, 1, 1], [], []>} : vector<8x6xf32>, vector<6x92xf32>, vector<8x92xf32> -> vector<8x92xf32>
    %10 = arith.addf %5, %9 : vector<8x92xf32>
    %c2 = arith.constant 2 : index
    %c0_8 = arith.constant 0 : index
    %c0_9 = arith.constant 0 : index
    %11 = vector.load %arg2[%c2, %c0_8, %c0_9] : memref<3x8x6xf32, #tpu.memory_space<vmem>>, vector<1x8x6xf32>
    %12 = vector.shape_cast %11 : vector<1x8x6xf32> to vector<8x6xf32>
    %13 = vector.extract_strided_slice %1 {offsets = [0, 2], sizes = [6, 92], strides = [1, 1]} : vector<6x94xf32> to vector<6x92xf32>
    %cst_10 = arith.constant dense<0.000000e+00> : vector<8x92xf32>
    %14 = tpu.matmul %12, %13, %cst_10 {dimension_numbers = #tpu.dot_dimension_numbers<[1], [0], [0], [1], [0, 0, 1, 1], [], []>} : vector<8x6xf32>, vector<6x92xf32>, vector<8x92xf32> -> vector<8x92xf32>
    %15 = arith.addf %10, %14 : vector<8x92xf32>
    %c0_11 = arith.constant 0 : index
    %c0_12 = arith.constant 0 : index
    %16 = vector.load %arg3[%c0_11, %c0_12] : memref<8x1xf32, #tpu.memory_space<vmem>>, vector<8x1xf32>
    %17 = vector.broadcast %16 : vector<8x1xf32> to vector<8x92xf32>
    %18 = arith.addf %15, %17 : vector<8x92xf32>
    %cst_13 = arith.constant 5.000000e-01 : f32
    %19 = vector.broadcast %cst_13 : f32 to vector<8x92xf32>
    %20 = arith.mulf %19, %18 : vector<8x92xf32>
    %cst_14 = arith.constant 4.471500e-02 : f32
    %21 = vector.broadcast %cst_14 : f32 to vector<8x92xf32>
    %22 = arith.mulf %21, %18 : vector<8x92xf32>
    %23 = arith.mulf %22, %18 : vector<8x92xf32>
    %24 = arith.mulf %23, %18 : vector<8x92xf32>
    %25 = arith.addf %18, %24 : vector<8x92xf32>
    %cst_15 = arith.constant 0.797884583 : f32
    %26 = vector.broadcast %cst_15 : f32 to vector<8x92xf32>
    %27 = arith.mulf %26, %25 : vector<8x92xf32>
    %28 = math.tanh %27 : vector<8x92xf32>
    %cst_16 = arith.constant 1.000000e+00 : f32
    %29 = vector.broadcast %cst_16 : f32 to vector<8x92xf32>
    %30 = arith.addf %29, %28 : vector<8x92xf32>
    %31 = arith.mulf %20, %30 : vector<8x92xf32>
    %c0_17 = arith.constant 0 : index
    %c0_18 = arith.constant 0 : index
    %c0_19 = arith.constant 0 : index
    %32 = vector.load %arg4[%c0_17, %c0_18, %c0_19] : memref<3x16x8xf32, #tpu.memory_space<vmem>>, vector<1x16x8xf32>
    %33 = vector.shape_cast %32 : vector<1x16x8xf32> to vector<16x8xf32>
    %34 = vector.extract_strided_slice %31 {offsets = [0, 0], sizes = [8, 88], strides = [1, 1]} : vector<8x92xf32> to vector<8x88xf32>
    %cst_20 = arith.constant dense<0.000000e+00> : vector<16x88xf32>
    %35 = tpu.matmul %33, %34, %cst_20 {dimension_numbers = #tpu.dot_dimension_numbers<[1], [0], [0], [1], [0, 0, 1, 1], [], []>} : vector<16x8xf32>, vector<8x88xf32>, vector<16x88xf32> -> vector<16x88xf32>
    %c1_21 = arith.constant 1 : index
    %c0_22 = arith.constant 0 : index
    %c0_23 = arith.constant 0 : index
    %36 = vector.load %arg4[%c1_21, %c0_22, %c0_23] : memref<3x16x8xf32, #tpu.memory_space<vmem>>, vector<1x16x8xf32>
    %37 = vector.shape_cast %36 : vector<1x16x8xf32> to vector<16x8xf32>
    %38 = vector.extract_strided_slice %31 {offsets = [0, 2], sizes = [8, 88], strides = [1, 1]} : vector<8x92xf32> to vector<8x88xf32>
    %cst_24 = arith.constant dense<0.000000e+00> : vector<16x88xf32>
    %39 = tpu.matmul %37, %38, %cst_24 {dimension_numbers = #tpu.dot_dimension_numbers<[1], [0], [0], [1], [0, 0, 1, 1], [], []>} : vector<16x8xf32>, vector<8x88xf32>, vector<16x88xf32> -> vector<16x88xf32>
    %40 = arith.addf %35, %39 : vector<16x88xf32>
    %c2_25 = arith.constant 2 : index
    %c0_26 = arith.constant 0 : index
    %c0_27 = arith.constant 0 : index
    %41 = vector.load %arg4[%c2_25, %c0_26, %c0_27] : memref<3x16x8xf32, #tpu.memory_space<vmem>>, vector<1x16x8xf32>
    %42 = vector.shape_cast %41 : vector<1x16x8xf32> to vector<16x8xf32>
    %43 = vector.extract_strided_slice %31 {offsets = [0, 4], sizes = [8, 88], strides = [1, 1]} : vector<8x92xf32> to vector<8x88xf32>
    %cst_28 = arith.constant dense<0.000000e+00> : vector<16x88xf32>
    %44 = tpu.matmul %42, %43, %cst_28 {dimension_numbers = #tpu.dot_dimension_numbers<[1], [0], [0], [1], [0, 0, 1, 1], [], []>} : vector<16x8xf32>, vector<8x88xf32>, vector<16x88xf32> -> vector<16x88xf32>
    %45 = arith.addf %40, %44 : vector<16x88xf32>
    %c0_29 = arith.constant 0 : index
    %c0_30 = arith.constant 0 : index
    %46 = vector.load %arg5[%c0_29, %c0_30] : memref<16x1xf32, #tpu.memory_space<vmem>>, vector<16x1xf32>
    %47 = vector.broadcast %46 : vector<16x1xf32> to vector<16x88xf32>
    %48 = arith.addf %45, %47 : vector<16x88xf32>
    %cst_31 = arith.constant 5.000000e-01 : f32
    %49 = vector.broadcast %cst_31 : f32 to vector<16x88xf32>
    %50 = arith.mulf %49, %48 : vector<16x88xf32>
    %cst_32 = arith.constant 4.471500e-02 : f32
    %51 = vector.broadcast %cst_32 : f32 to vector<16x88xf32>
    %52 = arith.mulf %51, %48 : vector<16x88xf32>
    %53 = arith.mulf %52, %48 : vector<16x88xf32>
    %54 = arith.mulf %53, %48 : vector<16x88xf32>
    %55 = arith.addf %48, %54 : vector<16x88xf32>
    %cst_33 = arith.constant 0.797884583 : f32
    %56 = vector.broadcast %cst_33 : f32 to vector<16x88xf32>
    %57 = arith.mulf %56, %55 : vector<16x88xf32>
    %58 = math.tanh %57 : vector<16x88xf32>
    %cst_34 = arith.constant 1.000000e+00 : f32
    %59 = vector.broadcast %cst_34 : f32 to vector<16x88xf32>
    %60 = arith.addf %59, %58 : vector<16x88xf32>
    %61 = arith.mulf %50, %60 : vector<16x88xf32>
    %c0_35 = arith.constant 0 : index
    %c0_36 = arith.constant 0 : index
    %c0_37 = arith.constant 0 : index
    %62 = vector.load %arg6[%c0_35, %c0_36, %c0_37] : memref<3x32x16xf32, #tpu.memory_space<vmem>>, vector<1x32x16xf32>
    %63 = vector.shape_cast %62 : vector<1x32x16xf32> to vector<32x16xf32>
    %64 = vector.extract_strided_slice %61 {offsets = [0, 0], sizes = [16, 80], strides = [1, 1]} : vector<16x88xf32> to vector<16x80xf32>
    %cst_38 = arith.constant dense<0.000000e+00> : vector<32x80xf32>
    %65 = tpu.matmul %63, %64, %cst_38 {dimension_numbers = #tpu.dot_dimension_numbers<[1], [0], [0], [1], [0, 0, 1, 1], [], []>} : vector<32x16xf32>, vector<16x80xf32>, vector<32x80xf32> -> vector<32x80xf32>
    %c1_39 = arith.constant 1 : index
    %c0_40 = arith.constant 0 : index
    %c0_41 = arith.constant 0 : index
    %66 = vector.load %arg6[%c1_39, %c0_40, %c0_41] : memref<3x32x16xf32, #tpu.memory_space<vmem>>, vector<1x32x16xf32>
    %67 = vector.shape_cast %66 : vector<1x32x16xf32> to vector<32x16xf32>
    %68 = vector.extract_strided_slice %61 {offsets = [0, 4], sizes = [16, 80], strides = [1, 1]} : vector<16x88xf32> to vector<16x80xf32>
    %cst_42 = arith.constant dense<0.000000e+00> : vector<32x80xf32>
    %69 = tpu.matmul %67, %68, %cst_42 {dimension_numbers = #tpu.dot_dimension_numbers<[1], [0], [0], [1], [0, 0, 1, 1], [], []>} : vector<32x16xf32>, vector<16x80xf32>, vector<32x80xf32> -> vector<32x80xf32>
    %70 = arith.addf %65, %69 : vector<32x80xf32>
    %c2_43 = arith.constant 2 : index
    %c0_44 = arith.constant 0 : index
    %c0_45 = arith.constant 0 : index
    %71 = vector.load %arg6[%c2_43, %c0_44, %c0_45] : memref<3x32x16xf32, #tpu.memory_space<vmem>>, vector<1x32x16xf32>
    %72 = vector.shape_cast %71 : vector<1x32x16xf32> to vector<32x16xf32>
    %73 = vector.extract_strided_slice %61 {offsets = [0, 8], sizes = [16, 80], strides = [1, 1]} : vector<16x88xf32> to vector<16x80xf32>
    %cst_46 = arith.constant dense<0.000000e+00> : vector<32x80xf32>
    %74 = tpu.matmul %72, %73, %cst_46 {dimension_numbers = #tpu.dot_dimension_numbers<[1], [0], [0], [1], [0, 0, 1, 1], [], []>} : vector<32x16xf32>, vector<16x80xf32>, vector<32x80xf32> -> vector<32x80xf32>
    %75 = arith.addf %70, %74 : vector<32x80xf32>
    %c0_47 = arith.constant 0 : index
    %c0_48 = arith.constant 0 : index
    %76 = vector.load %arg7[%c0_47, %c0_48] : memref<32x1xf32, #tpu.memory_space<vmem>>, vector<32x1xf32>
    %77 = vector.broadcast %76 : vector<32x1xf32> to vector<32x80xf32>
    %78 = arith.addf %75, %77 : vector<32x80xf32>
    %cst_49 = arith.constant 5.000000e-01 : f32
    %79 = vector.broadcast %cst_49 : f32 to vector<32x80xf32>
    %80 = arith.mulf %79, %78 : vector<32x80xf32>
    %cst_50 = arith.constant 4.471500e-02 : f32
    %81 = vector.broadcast %cst_50 : f32 to vector<32x80xf32>
    %82 = arith.mulf %81, %78 : vector<32x80xf32>
    %83 = arith.mulf %82, %78 : vector<32x80xf32>
    %84 = arith.mulf %83, %78 : vector<32x80xf32>
    %85 = arith.addf %78, %84 : vector<32x80xf32>
    %cst_51 = arith.constant 0.797884583 : f32
    %86 = vector.broadcast %cst_51 : f32 to vector<32x80xf32>
    %87 = arith.mulf %86, %85 : vector<32x80xf32>
    %88 = math.tanh %87 : vector<32x80xf32>
    %cst_52 = arith.constant 1.000000e+00 : f32
    %89 = vector.broadcast %cst_52 : f32 to vector<32x80xf32>
    %90 = arith.addf %89, %88 : vector<32x80xf32>
    %91 = arith.mulf %80, %90 : vector<32x80xf32>
    %c0_53 = arith.constant 0 : index
    %c0_54 = arith.constant 0 : index
    %c0_55 = arith.constant 0 : index
    %92 = vector.load %arg8[%c0_53, %c0_54, %c0_55] : memref<3x64x32xf32, #tpu.memory_space<vmem>>, vector<1x64x32xf32>
    %93 = vector.shape_cast %92 : vector<1x64x32xf32> to vector<64x32xf32>
    %94 = vector.extract_strided_slice %91 {offsets = [0, 0], sizes = [32, 64], strides = [1, 1]} : vector<32x80xf32> to vector<32x64xf32>
    %cst_56 = arith.constant dense<0.000000e+00> : vector<64x64xf32>
    %95 = tpu.matmul %93, %94, %cst_56 {dimension_numbers = #tpu.dot_dimension_numbers<[1], [0], [0], [1], [0, 0, 1, 1], [], []>} : vector<64x32xf32>, vector<32x64xf32>, vector<64x64xf32> -> vector<64x64xf32>
    %c1_57 = arith.constant 1 : index
    %c0_58 = arith.constant 0 : index
    %c0_59 = arith.constant 0 : index
    %96 = vector.load %arg8[%c1_57, %c0_58, %c0_59] : memref<3x64x32xf32, #tpu.memory_space<vmem>>, vector<1x64x32xf32>
    %97 = vector.shape_cast %96 : vector<1x64x32xf32> to vector<64x32xf32>
    %98 = vector.extract_strided_slice %91 {offsets = [0, 8], sizes = [32, 64], strides = [1, 1]} : vector<32x80xf32> to vector<32x64xf32>
    %cst_60 = arith.constant dense<0.000000e+00> : vector<64x64xf32>
    %99 = tpu.matmul %97, %98, %cst_60 {dimension_numbers = #tpu.dot_dimension_numbers<[1], [0], [0], [1], [0, 0, 1, 1], [], []>} : vector<64x32xf32>, vector<32x64xf32>, vector<64x64xf32> -> vector<64x64xf32>
    %100 = arith.addf %95, %99 : vector<64x64xf32>
    %c2_61 = arith.constant 2 : index
    %c0_62 = arith.constant 0 : index
    %c0_63 = arith.constant 0 : index
    %101 = vector.load %arg8[%c2_61, %c0_62, %c0_63] : memref<3x64x32xf32, #tpu.memory_space<vmem>>, vector<1x64x32xf32>
    %102 = vector.shape_cast %101 : vector<1x64x32xf32> to vector<64x32xf32>
    %103 = vector.extract_strided_slice %91 {offsets = [0, 16], sizes = [32, 64], strides = [1, 1]} : vector<32x80xf32> to vector<32x64xf32>
    %cst_64 = arith.constant dense<0.000000e+00> : vector<64x64xf32>
    %104 = tpu.matmul %102, %103, %cst_64 {dimension_numbers = #tpu.dot_dimension_numbers<[1], [0], [0], [1], [0, 0, 1, 1], [], []>} : vector<64x32xf32>, vector<32x64xf32>, vector<64x64xf32> -> vector<64x64xf32>
    %105 = arith.addf %100, %104 : vector<64x64xf32>
    %c0_65 = arith.constant 0 : index
    %c0_66 = arith.constant 0 : index
    %106 = vector.load %arg9[%c0_65, %c0_66] : memref<64x1xf32, #tpu.memory_space<vmem>>, vector<64x1xf32>
    %107 = vector.broadcast %106 : vector<64x1xf32> to vector<64x64xf32>
    %108 = arith.addf %105, %107 : vector<64x64xf32>
    %cst_67 = arith.constant 5.000000e-01 : f32
    %109 = vector.broadcast %cst_67 : f32 to vector<64x64xf32>
    %110 = arith.mulf %109, %108 : vector<64x64xf32>
    %cst_68 = arith.constant 4.471500e-02 : f32
    %111 = vector.broadcast %cst_68 : f32 to vector<64x64xf32>
    %112 = arith.mulf %111, %108 : vector<64x64xf32>
    %113 = arith.mulf %112, %108 : vector<64x64xf32>
    %114 = arith.mulf %113, %108 : vector<64x64xf32>
    %115 = arith.addf %108, %114 : vector<64x64xf32>
    %cst_69 = arith.constant 0.797884583 : f32
    %116 = vector.broadcast %cst_69 : f32 to vector<64x64xf32>
    %117 = arith.mulf %116, %115 : vector<64x64xf32>
    %118 = math.tanh %117 : vector<64x64xf32>
    %cst_70 = arith.constant 1.000000e+00 : f32
    %119 = vector.broadcast %cst_70 : f32 to vector<64x64xf32>
    %120 = arith.addf %119, %118 : vector<64x64xf32>
    %121 = arith.mulf %110, %120 : vector<64x64xf32>
    %c0_71 = arith.constant 0 : index
    %c0_72 = arith.constant 0 : index
    %c0_73 = arith.constant 0 : index
    %122 = vector.load %arg10[%c0_71, %c0_72, %c0_73] : memref<1x16x64xf32, #tpu.memory_space<vmem>>, vector<1x16x64xf32>
    %123 = vector.shape_cast %122 : vector<1x16x64xf32> to vector<16x64xf32>
    %cst_74 = arith.constant dense<0.000000e+00> : vector<16x64xf32>
    %124 = tpu.matmul %123, %121, %cst_74 {dimension_numbers = #tpu.dot_dimension_numbers<[1], [0], [0], [1], [0, 0, 1, 1], [], []>} : vector<16x64xf32>, vector<64x64xf32>, vector<16x64xf32> -> vector<16x64xf32>
    %c0_75 = arith.constant 0 : index
    %c0_76 = arith.constant 0 : index
    %125 = vector.load %arg11[%c0_75, %c0_76] : memref<16x1xf32, #tpu.memory_space<vmem>>, vector<16x1xf32>
    %126 = vector.broadcast %125 : vector<16x1xf32> to vector<16x64xf32>
    %127 = arith.addf %124, %126 : vector<16x64xf32>
    %c0_77 = arith.constant 0 : index
    %c0_78 = arith.constant 0 : index
    %c0_79 = arith.constant 0 : index
    %128 = vector.load %arg12[%c0_77, %c0_78, %c0_79] : memref<1x16x64xf32, #tpu.memory_space<vmem>>, vector<1x16x64xf32>
    %129 = vector.shape_cast %128 : vector<1x16x64xf32> to vector<16x64xf32>
    %130 = vector.shape_cast %127 : vector<16x64xf32> to vector<1x16x64xf32>
    tpu.vector_store %arg12[%c0_77, %c0_78, %c0_79], %130 {strides = array<i32>} : memref<1x16x64xf32, #tpu.memory_space<vmem>>, vector<1x16x64xf32>,
    return
  }
  func.func @transform_0(%arg0: i32) -> (i32, i32, i32) {
    %c0_i32 = arith.constant 0 : i32
    %c0_i32_0 = arith.constant 0 : i32
    %c0_i32_1 = arith.constant 0 : i32
    return %arg0, %c0_i32, %c0_i32_0 : i32, i32, i32
  }
  func.func @transform_1(%arg0: i32) -> (i32, i32, i32) {
    %c0_i32 = arith.constant 0 : i32
    %c0_i32_0 = arith.constant 0 : i32
    %c0_i32_1 = arith.constant 0 : i32
    %c0_i32_2 = arith.constant 0 : i32
    return %c0_i32, %c0_i32_0, %c0_i32_1 : i32, i32, i32
  }
  func.func @transform_2(%arg0: i32) -> (i32, i32) {
    %c0_i32 = arith.constant 0 : i32
    %c0_i32_0 = arith.constant 0 : i32
    %c0_i32_1 = arith.constant 0 : i32
    return %c0_i32, %c0_i32_0 : i32, i32
  }
  func.func @transform_3(%arg0: i32) -> (i32, i32, i32) {
    %c0_i32 = arith.constant 0 : i32
    %c0_i32_0 = arith.constant 0 : i32
    %c0_i32_1 = arith.constant 0 : i32
    %c0_i32_2 = arith.constant 0 : i32
    return %c0_i32, %c0_i32_0, %c0_i32_1 : i32, i32, i32
  }
  func.func @transform_4(%arg0: i32) -> (i32, i32) {
    %c0_i32 = arith.constant 0 : i32
    %c0_i32_0 = arith.constant 0 : i32
    %c0_i32_1 = arith.constant 0 : i32
    return %c0_i32, %c0_i32_0 : i32, i32
  }
  func.func @transform_5(%arg0: i32) -> (i32, i32, i32) {
    %c0_i32 = arith.constant 0 : i32
    %c0_i32_0 = arith.constant 0 : i32
    %c0_i32_1 = arith.constant 0 : i32
    %c0_i32_2 = arith.constant 0 : i32
    return %c0_i32, %c0_i32_0, %c0_i32_1 : i32, i32, i32
  }
  func.func @transform_6(%arg0: i32) -> (i32, i32) {
    %c0_i32 = arith.constant 0 : i32
    %c0_i32_0 = arith.constant 0 : i32
    %c0_i32_1 = arith.constant 0 : i32
    return %c0_i32, %c0_i32_0 : i32, i32
  }
  func.func @transform_7(%arg0: i32) -> (i32, i32, i32) {
    %c0_i32 = arith.constant 0 : i32
    %c0_i32_0 = arith.constant 0 : i32
    %c0_i32_1 = arith.constant 0 : i32
    %c0_i32_2 = arith.constant 0 : i32
    return %c0_i32, %c0_i32_0, %c0_i32_1 : i32, i32, i32
  }
  func.func @transform_8(%arg0: i32) -> (i32, i32) {
    %c0_i32 = arith.constant 0 : i32
    %c0_i32_0 = arith.constant 0 : i32
    %c0_i32_1 = arith.constant 0 : i32
    return %c0_i32, %c0_i32_0 : i32, i32
  }
  func.func @transform_9(%arg0: i32) -> (i32, i32, i32) {
    %c0_i32 = arith.constant 0 : i32
    %c0_i32_0 = arith.constant 0 : i32
    %c0_i32_1 = arith.constant 0 : i32
    %c0_i32_2 = arith.constant 0 : i32
    return %c0_i32, %c0_i32_0, %c0_i32_1 : i32, i32, i32
  }
  func.func @transform_10(%arg0: i32) -> (i32, i32) {
    %c0_i32 = arith.constant 0 : i32
    %c0_i32_0 = arith.constant 0 : i32
    %c0_i32_1 = arith.constant 0 : i32
    return %c0_i32, %c0_i32_0 : i32, i32
  }
  func.func @transform_11(%arg0: i32) -> (i32, i32, i32) {
    %c0_i32 = arith.constant 0 : i32
    %c0_i32_0 = arith.constant 0 : i32
    %c0_i32_1 = arith.constant 0 : i32
    return %arg0, %c0_i32, %c0_i32_0 : i32, i32, i32
  }
}

</mosaic_0001>

<llo_original>
// kernel: tpu_custom_call.1
$region0: #{tpu_custom_call.1}
  #allocation0 [shape = 'u32[]', space=smem, size = 0x4, offset = 0x4, fixed_abs, tag = 'smem constant byte address 0x4 - core index']
  #allocation1 [shape = 'u32[144,128]{1,0:T(1,128)}', space=vmem, size = 0x12000, scoped, tag = 'internal scratch']
  %s0 = inlined_call_operand.vmem [shape: f32[2,6,94], index: 0, kind: input, shape index: {}]
  %s1 = inlined_call_operand.vmem [shape: f32[3,8,6], index: 1, kind: input, shape index: {}]
  %s2 = inlined_call_operand.vmem [shape: f32[8,1], index: 2, kind: input, shape index: {}]
  %s3 = inlined_call_operand.vmem [shape: f32[3,16,8], index: 3, kind: input, shape index: {}]
  %s4 = inlined_call_operand.vmem [shape: f32[16,1], index: 4, kind: input, shape index: {}]
  %s5 = inlined_call_operand.vmem [shape: f32[3,32,16], index: 5, kind: input, shape index: {}]
  %s6 = inlined_call_operand.vmem [shape: f32[32,1], index: 6, kind: input, shape index: {}]
  %s7 = inlined_call_operand.vmem [shape: f32[3,64,32], index: 7, kind: input, shape index: {}]
  %s8 = inlined_call_operand.vmem [shape: f32[64,1], index: 8, kind: input, shape index: {}]
  %s9 = inlined_call_operand.vmem [shape: f32[1,16,64], index: 9, kind: input, shape index: {}]
  %s10 = inlined_call_operand.vmem [shape: f32[16,1], index: 10, kind: input, shape index: {}]
  %s11 = inlined_call_operand.hbm [shape: f32[2,16,64], index: 11, kind: output, shape index: {}]
  %s12 = sld [smem:[#allocation0]]
  $region77: #{tpu_custom_call.1} parent=0
    _
  %s14 = ssub.s32 1, %s12
  %s15 = scalar_select 0, %s14, %s12
  $region1: #{tpu_custom_call.1} parent=0
    #allocation2 [shape = 'u8[16384]{0}', space=vmem, size = 0x4000, scoped, tag = 'output window, operand 0']
    #allocation3 [shape = 's32[2]{0}', space=sflag, size = 0x8, scoped, tag = 'scoped memory for tpu_custom_call.1']
    %16 = vsyncpa [#allocation3], 0
    %s17 = scalar_lea.sflag [#allocation3], 1
    %18 = vsyncpa %s17, 0
    loop: start=0, step=1, limit=4
    $region2: #{tpu_custom_call.1} parent=1 // loop_pre_header
      _
    $region3: #{tpu_custom_call.1} parent=1 // loop_header
      %s20 = sphi 0, %s24
      %p21 = scmp.ge.s32.totalorder %s20, 4
      %s30 = sphi 0, %s32
      %s33 = sphi 0, %s30
      %s34 = sphi 0, %s33
      %s50 = sphi 0, %s34
      %s54 = sphi 0, %s54
      %s56 = sphi 0, %s54
      %s57 = sphi 0, %s56
      %s71 = sphi 0, %s57
      %s75 = sphi 0, %s75
      %s77 = sphi 0, %s75
      %s78 = sphi 0, %s77
      %s92 = sphi 0, %s78
      %s96 = sphi 0, %s96
      %s98 = sphi 0, %s96
      %s99 = sphi 0, %s98
      %s113 = sphi 0, %s99
      %s117 = sphi 0, %s117
      %s119 = sphi 0, %s117
      %s120 = sphi 0, %s119
      %s134 = sphi 0, %s120
      %s138 = sphi 0, %s138
      %s140 = sphi 0, %s138
      %s141 = sphi 0, %s140
      %s155 = sphi 0, %s141
      %s159 = sphi 0, %s159
      %s161 = sphi 0, %s159
      %s162 = sphi 0, %s161
      %s176 = sphi 0, %s162
      %s180 = sphi 0, %s180
      %s182 = sphi 0, %s180
      %s183 = sphi 0, %s182
      %s197 = sphi 0, %s183
      %s201 = sphi 0, %s201
      %s203 = sphi 0, %s201
      %s204 = sphi 0, %s203
      %s218 = sphi 0, %s204
      %s222 = sphi 0, %s222
      %s224 = sphi 0, %s222
      %s225 = sphi 0, %s224
      %s239 = sphi 0, %s225
      %s243 = sphi 0, %s243
      %s245 = sphi 0, %s243
      %s246 = sphi 0, %s245
      %s260 = sphi 0, %s246
      %s266 = sphi 0, %s268
      %s269 = sphi 0, %s266
      %s270 = sphi 0, %s269
      %s286 = sphi 0, %s270
    $region4: #{tpu_custom_call.1} parent=1 // loop_header_branch
      %23 = sbr.rel (%p21) target = $region8
    $region5: #{tpu_custom_call.1} parent=1 // loop_body
      %s25 = ssub.s32 %s20, 1
      %s26 = ssub.s32 %s20, 2
      %s27 = sadd.s32 %s20, 1
      %s28 = ssub.s32 %s20, %s27
      %p29 = scmp.eq.s32.totalorder %s28, 0
      %s31 = sadd.s32 %s30, 1
      %s32 = scalar_select %p29, %s30, %s31
      %p35 = pneg %p29
      %p36 = scmp.eq.s32.totalorder %s20, 1
      %p37 = por %p35, %p36
      %p38 = scmp.ne.s32.totalorder %s30, %s33
      %p39 = scmp.eq.s32.totalorder %s20, 0
      %p40 = por %p38, %p39
      %p41 = scmp.ne.s32.totalorder %s30, %s33
      %p42 = scmp.eq.s32.totalorder %s25, 1
      %p43 = por %p41, %p42
      %p44 = scmp.ne.s32.totalorder %s33, %s34
      %p45 = scmp.eq.s32.totalorder %s25, 0
      %p46 = por %p44, %p45
      %p47 = scmp.ne.s32.totalorder %s33, %s34
      %p48 = scmp.eq.s32.totalorder %s26, 1
      %p49 = por %p47, %p48
      %p51 = scmp.ne.s32.totalorder %s34, %s50
      %p52 = scmp.eq.s32.totalorder %s26, 0
      %p53 = por %p51, %p52
      %s55 = sadd.s32 %s54, 1
      %p58 = scmp.eq.s32.totalorder %s20, 1
      %p59 = scmp.ne.s32.totalorder %s54, %s56
      %p60 = scmp.eq.s32.totalorder %s20, 0
      %p61 = por %p59, %p60
      %p62 = scmp.ne.s32.totalorder %s54, %s56
      %p63 = scmp.eq.s32.totalorder %s25, 1
      %p64 = por %p62, %p63
      %p65 = scmp.ne.s32.totalorder %s56, %s57
      %p66 = scmp.eq.s32.totalorder %s25, 0
      %p67 = por %p65, %p66
      %p68 = scmp.ne.s32.totalorder %s56, %s57
      %p69 = scmp.eq.s32.totalorder %s26, 1
      %p70 = por %p68, %p69
      %p72 = scmp.ne.s32.totalorder %s57, %s71
      %p73 = scmp.eq.s32.totalorder %s26, 0
      %p74 = por %p72, %p73
      %s76 = sadd.s32 %s75, 1
      %p79 = scmp.eq.s32.totalorder %s20, 1
      %p80 = scmp.ne.s32.totalorder %s75, %s77
      %p81 = scmp.eq.s32.totalorder %s20, 0
      %p82 = por %p80, %p81
      %p83 = scmp.ne.s32.totalorder %s75, %s77
      %p84 = scmp.eq.s32.totalorder %s25, 1
      %p85 = por %p83, %p84
      %p86 = scmp.ne.s32.totalorder %s77, %s78
      %p87 = scmp.eq.s32.totalorder %s25, 0
      %p88 = por %p86, %p87
      %p89 = scmp.ne.s32.totalorder %s77, %s78
      %p90 = scmp.eq.s32.totalorder %s26, 1
      %p91 = por %p89, %p90
      %p93 = scmp.ne.s32.totalorder %s78, %s92
      %p94 = scmp.eq.s32.totalorder %s26, 0
      %p95 = por %p93, %p94
      %s97 = sadd.s32 %s96, 1
      %p100 = scmp.eq.s32.totalorder %s20, 1
      %p101 = scmp.ne.s32.totalorder %s96, %s98
      %p102 = scmp.eq.s32.totalorder %s20, 0
      %p103 = por %p101, %p102
      %p104 = scmp.ne.s32.totalorder %s96, %s98
      %p105 = scmp.eq.s32.totalorder %s25, 1
      %p106 = por %p104, %p105
      %p107 = scmp.ne.s32.totalorder %s98, %s99
      %p108 = scmp.eq.s32.totalorder %s25, 0
      %p109 = por %p107, %p108
      %p110 = scmp.ne.s32.totalorder %s98, %s99
      %p111 = scmp.eq.s32.totalorder %s26, 1
      %p112 = por %p110, %p111
      %p114 = scmp.ne.s32.totalorder %s99, %s113
      %p115 = scmp.eq.s32.totalorder %s26, 0
      %p116 = por %p114, %p115
      %s118 = sadd.s32 %s117, 1
      %p121 = scmp.eq.s32.totalorder %s20, 1
      %p122 = scmp.ne.s32.totalorder %s117, %s119
      %p123 = scmp.eq.s32.totalorder %s20, 0
      %p124 = por %p122, %p123
      %p125 = scmp.ne.s32.totalorder %s117, %s119
      %p126 = scmp.eq.s32.totalorder %s25, 1
      %p127 = por %p125, %p126
      %p128 = scmp.ne.s32.totalorder %s119, %s120
      %p129 = scmp.eq.s32.totalorder %s25, 0
      %p130 = por %p128, %p129
      %p131 = scmp.ne.s32.totalorder %s119, %s120
      %p132 = scmp.eq.s32.totalorder %s26, 1
      %p133 = por %p131, %p132
      %p135 = scmp.ne.s32.totalorder %s120, %s134
      %p136 = scmp.eq.s32.totalorder %s26, 0
      %p137 = por %p135, %p136
      %s139 = sadd.s32 %s138, 1
      %p142 = scmp.eq.s32.totalorder %s20, 1
      %p143 = scmp.ne.s32.totalorder %s138, %s140
      %p144 = scmp.eq.s32.totalorder %s20, 0
      %p145 = por %p143, %p144
      %p146 = scmp.ne.s32.totalorder %s138, %s140
      %p147 = scmp.eq.s32.totalorder %s25, 1
      %p148 = por %p146, %p147
      %p149 = scmp.ne.s32.totalorder %s140, %s141
      %p150 = scmp.eq.s32.totalorder %s25, 0
      %p151 = por %p149, %p150
      %p152 = scmp.ne.s32.totalorder %s140, %s141
      %p153 = scmp.eq.s32.totalorder %s26, 1
      %p154 = por %p152, %p153
      %p156 = scmp.ne.s32.totalorder %s141, %s155
      %p157 = scmp.eq.s32.totalorder %s26, 0
      %p158 = por %p156, %p157
      %s160 = sadd.s32 %s159, 1
      %p163 = scmp.eq.s32.totalorder %s20, 1
      %p164 = scmp.ne.s32.totalorder %s159, %s161
      %p165 = scmp.eq.s32.totalorder %s20, 0
      %p166 = por %p164, %p165
      %p167 = scmp.ne.s32.totalorder %s159, %s161
      %p168 = scmp.eq.s32.totalorder %s25, 1
      %p169 = por %p167, %p168
      %p170 = scmp.ne.s32.totalorder %s161, %s162
      %p171 = scmp.eq.s32.totalorder %s25, 0
      %p172 = por %p170, %p171
      %p173 = scmp.ne.s32.totalorder %s161, %s162
      %p174 = scmp.eq.s32.totalorder %s26, 1
      %p175 = por %p173, %p174
      %p177 = scmp.ne.s32.totalorder %s162, %s176
      %p178 = scmp.eq.s32.totalorder %s26, 0
      %p179 = por %p177, %p178
      %s181 = sadd.s32 %s180, 1
      %p184 = scmp.eq.s32.totalorder %s20, 1
      %p185 = scmp.ne.s32.totalorder %s180, %s182
      %p186 = scmp.eq.s32.totalorder %s20, 0
      %p187 = por %p185, %p186
      %p188 = scmp.ne.s32.totalorder %s180, %s182
      %p189 = scmp.eq.s32.totalorder %s25, 1
      %p190 = por %p188, %p189
      %p191 = scmp.ne.s32.totalorder %s182, %s183
      %p192 = scmp.eq.s32.totalorder %s25, 0
      %p193 = por %p191, %p192
      %p194 = scmp.ne.s32.totalorder %s182, %s183
      %p195 = scmp.eq.s32.totalorder %s26, 1
      %p196 = por %p194, %p195
      %p198 = scmp.ne.s32.totalorder %s183, %s197
      %p199 = scmp.eq.s32.totalorder %s26, 0
      %p200 = por %p198, %p199
      %s202 = sadd.s32 %s201, 1
      %p205 = scmp.eq.s32.totalorder %s20, 1
      %p206 = scmp.ne.s32.totalorder %s201, %s203
      %p207 = scmp.eq.s32.totalorder %s20, 0
      %p208 = por %p206, %p207
      %p209 = scmp.ne.s32.totalorder %s201, %s203
      %p210 = scmp.eq.s32.totalorder %s25, 1
      %p211 = por %p209, %p210
      %p212 = scmp.ne.s32.totalorder %s203, %s204
      %p213 = scmp.eq.s32.totalorder %s25, 0
      %p214 = por %p212, %p213
      %p215 = scmp.ne.s32.totalorder %s203, %s204
      %p216 = scmp.eq.s32.totalorder %s26, 1
      %p217 = por %p215, %p216
      %p219 = scmp.ne.s32.totalorder %s204, %s218
      %p220 = scmp.eq.s32.totalorder %s26, 0
      %p221 = por %p219, %p220
      %s223 = sadd.s32 %s222, 1
      %p226 = scmp.eq.s32.totalorder %s20, 1
      %p227 = scmp.ne.s32.totalorder %s222, %s224
      %p228 = scmp.eq.s32.totalorder %s20, 0
      %p229 = por %p227, %p228
      %p230 = scmp.ne.s32.totalorder %s222, %s224
      %p231 = scmp.eq.s32.totalorder %s25, 1
      %p232 = por %p230, %p231
      %p233 = scmp.ne.s32.totalorder %s224, %s225
      %p234 = scmp.eq.s32.totalorder %s25, 0
      %p235 = por %p233, %p234
      %p236 = scmp.ne.s32.totalorder %s224, %s225
      %p237 = scmp.eq.s32.totalorder %s26, 1
      %p238 = por %p236, %p237
      %p240 = scmp.ne.s32.totalorder %s225, %s239
      %p241 = scmp.eq.s32.totalorder %s26, 0
      %p242 = por %p240, %p241
      %s244 = sadd.s32 %s243, 1
      %p247 = scmp.eq.s32.totalorder %s20, 1
      %p248 = scmp.ne.s32.totalorder %s243, %s245
      %p249 = scmp.eq.s32.totalorder %s20, 0
      %p250 = por %p248, %p249
      %p251 = scmp.ne.s32.totalorder %s243, %s245
      %p252 = scmp.eq.s32.totalorder %s25, 1
      %p253 = por %p251, %p252
      %p254 = scmp.ne.s32.totalorder %s245, %s246
      %p255 = scmp.eq.s32.totalorder %s25, 0
      %p256 = por %p254, %p255
      %p257 = scmp.ne.s32.totalorder %s245, %s246
      %p258 = scmp.eq.s32.totalorder %s26, 1
      %p259 = por %p257, %p258
      %p261 = scmp.ne.s32.totalorder %s246, %s260
      %p262 = scmp.eq.s32.totalorder %s26, 0
      %p263 = por %p261, %p262
      %s264 = ssub.s32 %s20, %s27
      %p265 = scmp.eq.s32.totalorder %s264, 0
      %s267 = sadd.s32 %s266, 1
      %s268 = scalar_select %p265, %s266, %s267
      %p271 = pneg %p265
      %p272 = scmp.eq.s32.totalorder %s20, 1
      %p273 = por %p271, %p272
      %p274 = scmp.ne.s32.totalorder %s266, %s269
      %p275 = scmp.eq.s32.totalorder %s20, 0
      %p276 = por %p274, %p275
      %p277 = scmp.ne.s32.totalorder %s266, %s269
      %p278 = scmp.eq.s32.totalorder %s25, 1
      %p279 = por %p277, %p278
      %p280 = scmp.ne.s32.totalorder %s269, %s270
      %p281 = scmp.eq.s32.totalorder %s25, 0
      %p282 = por %p280, %p281
      %p283 = scmp.ne.s32.totalorder %s269, %s270
      %p284 = scmp.eq.s32.totalorder %s26, 1
      %p285 = por %p283, %p284
      %p287 = scmp.ne.s32.totalorder %s270, %s286
      %p288 = scmp.eq.s32.totalorder %s26, 0
      %p289 = por %p287, %p288
      %p290 = scmp.le.s32.totalorder 1, %s20
      %p291 = scmp.lt.s32.totalorder %s20, 3
      %p292 = pnand %p290, %p291
      %p293 = pneg %p292
      // Predicated region
      $region9: #{tpu_custom_call.1} parent=5 // pred_check
        _
      $region10: #{tpu_custom_call.1} parent=5 // pred_check_branch
        %295 = sbr.rel (%p292) target = $region12
      $region11: #{tpu_custom_call.1} parent=5 // pred_region
        %s296 = ssub.s32 %s20, 1
        // Predicated region
        $region13: #{tpu_custom_call.1} parent=11 // pred_check
          %p297 = pneg %p67
        $region14: #{tpu_custom_call.1} parent=11 // pred_check_branch
          %299 = sbr.rel (%p297) target = $region16
        $region15: #{tpu_custom_call.1} parent=11 // pred_region
          _
        $region16: #{tpu_custom_call.1} parent=11 // pred_fallthru
          _
        // Predicated region
        $region17: #{tpu_custom_call.1} parent=11 // pred_check
          %p300 = pneg %p88
        $region18: #{tpu_custom_call.1} parent=11 // pred_check_branch
          %302 = sbr.rel (%p300) target = $region20
        $region19: #{tpu_custom_call.1} parent=11 // pred_region
          _
        $region20: #{tpu_custom_call.1} parent=11 // pred_fallthru
          _
        // Predicated region
        $region21: #{tpu_custom_call.1} parent=11 // pred_check
          %p303 = pneg %p109
        $region22: #{tpu_custom_call.1} parent=11 // pred_check_branch
          %305 = sbr.rel (%p303) target = $region24
        $region23: #{tpu_custom_call.1} parent=11 // pred_region
          _
        $region24: #{tpu_custom_call.1} parent=11 // pred_fallthru
          _
        // Predicated region
        $region25: #{tpu_custom_call.1} parent=11 // pred_check
          %p306 = pneg %p130
        $region26: #{tpu_custom_call.1} parent=11 // pred_check_branch
          %308 = sbr.rel (%p306) target = $region28
        $region27: #{tpu_custom_call.1} parent=11 // pred_region
          _
        $region28: #{tpu_custom_call.1} parent=11 // pred_fallthru
          _
        // Predicated region
        $region29: #{tpu_custom_call.1} parent=11 // pred_check
          %p309 = pneg %p151
        $region30: #{tpu_custom_call.1} parent=11 // pred_check_branch
          %311 = sbr.rel (%p309) target = $region32
        $region31: #{tpu_custom_call.1} parent=11 // pred_region
          _
        $region32: #{tpu_custom_call.1} parent=11 // pred_fallthru
          _
        // Predicated region
        $region33: #{tpu_custom_call.1} parent=11 // pred_check
          %p312 = pneg %p172
        $region34: #{tpu_custom_call.1} parent=11 // pred_check_branch
          %314 = sbr.rel (%p312) target = $region36
        $region35: #{tpu_custom_call.1} parent=11 // pred_region
          _
        $region36: #{tpu_custom_call.1} parent=11 // pred_fallthru
          _
        // Predicated region
        $region37: #{tpu_custom_call.1} parent=11 // pred_check
          %p315 = pneg %p193
        $region38: #{tpu_custom_call.1} parent=11 // pred_check_branch
          %317 = sbr.rel (%p315) target = $region40
        $region39: #{tpu_custom_call.1} parent=11 // pred_region
          _
        $region40: #{tpu_custom_call.1} parent=11 // pred_fallthru
          _
        // Predicated region
        $region41: #{tpu_custom_call.1} parent=11 // pred_check
          %p318 = pneg %p214
        $region42: #{tpu_custom_call.1} parent=11 // pred_check_branch
          %320 = sbr.rel (%p318) target = $region44
        $region43: #{tpu_custom_call.1} parent=11 // pred_region
          _
        $region44: #{tpu_custom_call.1} parent=11 // pred_fallthru
          _
        // Predicated region
        $region45: #{tpu_custom_call.1} parent=11 // pred_check
          %p321 = pneg %p235
        $region46: #{tpu_custom_call.1} parent=11 // pred_check_branch
          %323 = sbr.rel (%p321) target = $region48
        $region47: #{tpu_custom_call.1} parent=11 // pred_region
          _
        $region48: #{tpu_custom_call.1} parent=11 // pred_fallthru
          _
        // Predicated region
        $region49: #{tpu_custom_call.1} parent=11 // pred_check
          %p324 = pneg %p256
        $region50: #{tpu_custom_call.1} parent=11 // pred_check_branch
          %326 = sbr.rel (%p324) target = $region52
        $region51: #{tpu_custom_call.1} parent=11 // pred_region
          _
        $region52: #{tpu_custom_call.1} parent=11 // pred_fallthru
          _
      $region12: #{tpu_custom_call.1} parent=5 // pred_fallthru
        _
      %p327 = scmp.lt.s32.totalorder %s20, 2
      // Predicated region
      $region53: #{tpu_custom_call.1} parent=5 // pred_check
        %p328 = pneg %p327
      $region54: #{tpu_custom_call.1} parent=5 // pred_check_branch
        %330 = sbr.rel (%p328) target = $region56
      $region55: #{tpu_custom_call.1} parent=5 // pred_region
        // Predicated region
        $region57: #{tpu_custom_call.1} parent=55 // pred_check
          %p331 = pneg %p40
        $region58: #{tpu_custom_call.1} parent=55 // pred_check_branch
          %333 = sbr.rel (%p331) target = $region60
        $region59: #{tpu_custom_call.1} parent=55 // pred_region
          %p334 = scmp.lt.s32.totalorder %s20, 1
          %s335 = scalar_select %p334, %s20, 1
          %s336 = smul.addr %s335, 8
          %s337 = scalar_lea.vmem %s0, %s336
        $region60: #{tpu_custom_call.1} parent=55 // pred_fallthru
          _
      $region56: #{tpu_custom_call.1} parent=5 // pred_fallthru
        _
      %p338 = scmp.le.s32.totalorder 1, %s20
      %p339 = scmp.lt.s32.totalorder %s20, 3
      %p340 = pnand %p338, %p339
      %p341 = pneg %p340
      // Predicated region
      $region61: #{tpu_custom_call.1} parent=5 // pred_check
        _
      $region62: #{tpu_custom_call.1} parent=5 // pred_check_branch
        %343 = sbr.rel (%p340) target = $region64
      $region63: #{tpu_custom_call.1} parent=5 // pred_region
        %s344 = ssub.s32 %s20, 1
        %p345 = scmp.lt.s32.totalorder %s25, 1
        %s346 = scalar_select %p345, %s25, 1
        %s347 = smul.addr %s346, 8
        %s348 = scalar_lea.vmem %s0, %s347
        %p349 = pneg %p46
        %p350 = pneg %p43
        %p351 = pneg %p67
        %p352 = pneg %p64
        %p353 = pneg %p88
        %p354 = pneg %p85
        %p355 = pneg %p109
        %p356 = pneg %p106
        %p357 = pneg %p130
        %p358 = pneg %p127
        %p359 = pneg %p151
        %p360 = pneg %p148
        %p361 = pneg %p172
        %p362 = pneg %p169
        %p363 = pneg %p193
        %p364 = pneg %p190
        %p365 = pneg %p214
        %p366 = pneg %p211
        %p367 = pneg %p235
        %p368 = pneg %p232
        %p369 = pneg %p256
        %p370 = pneg %p253
        %p371 = pneg %p282
        %p372 = pneg %p279
        %s373 = sand.u32 %s269, 1
        %s374 = scalar_lea.sflag [#allocation3], %s373
        %s375 = sand.u32 %s269, 1
        %s376 = smul.addr %s375, 16
        %s377 = scalar_lea.vmem [#allocation2], %s376
        %p378 = scmp.lt.s32.totalorder %s25, 1
        %s379 = scalar_select %p378, %s25, 1
        %s380 = smul.addr %s379, 8
        %s381 = scalar_lea.vmem %s0, %s380
        %v382 = vld [vmem:[%s381] sm:$0x3f]
        %v383 = vld [vmem:[%s1] sm:$0xff]
        %s384 = scalar_lea.vmem %s1, 8
        %v385 = vld [vmem:[%s384] sm:$0xff]
        %387 = vrot.lane.b32.xlu0 %v382, 127
        %v388 = vpop.permute.xlu0 %387
        %vm389 = vcmask 48128
        %v391 = vsel %vm389, %v385, 0
        %vm393 = vcmask 1045504
        %v394 = vsel %vm393, %v388, 0
        %396 = vmatprep.subr.mxu0 0.0
        %397 = vmatpush1.msra.mxu0 %v394
        %398 = vmatprep.subr.mxu0 0.0
        %399 = vmatpush1.msra.mxu0 0.0
        %400 = vmatprep.subr.mxu0 0.0
        %401 = vmatpush1.msra.mxu0 0.0
        %402 = vmatprep.subr.mxu0 0.0
        %403 = vmatpush1.msra.mxu0 0.0
        %404 = vmatprep.subr.mxu0 0.0
        %405 = vmatpush1.msra.mxu0 0.0
        %406 = vmatprep.subr.mxu0 0.0
        %407 = vmatpush1.msra.mxu0 0.0
        %408 = vmatprep.subr.mxu0 0.0
        %409 = vmatpush1.msra.mxu0 0.0
        %410 = vmatprep.subr.mxu0 0.0
        %411 = vmatpush1.msra.mxu0 0.0
        %412 = vmatprep.subr.mxu0 0.0
        %413 = vmatpush1.msra.mxu0 0.0
        %414 = vmatprep.subr.mxu0 0.0
        %415 = vmatpush1.msra.mxu0 0.0
        %416 = vmatprep.subr.mxu0 0.0
        %417 = vmatpush1.msra.mxu0 0.0
        %418 = vmatprep.subr.mxu0 0.0
        %419 = vmatpush1.msra.mxu0 0.0
        %420 = vmatprep.subr.mxu0 0.0
        %421 = vmatpush1.msra.mxu0 0.0
        %422 = vmatprep.subr.mxu0 0.0
        %423 = vmatpush1.msra.mxu0 0.0
        %424 = vmatprep.subr.mxu0 0.0
        %425 = vmatpush1.msra.mxu0 0.0
        %426 = vmatprep.subr.mxu0 0.0
        %427 = vmatpush1.msra.mxu0 0.0
        %428 = vmatprep.subr.mxu0 0.0
        %429 = vmatpush1.msra.mxu0 0.0
        %430 = vmatprep.subr.mxu0 0.0
        %431 = vmatpush1.msra.mxu0 0.0
        %432 = vmatprep.subr.mxu0 0.0
        %433 = vmatpush1.msra.mxu0 0.0
        %434 = vmatprep.subr.mxu0 0.0
        %435 = vmatpush1.msra.mxu0 0.0
        %436 = vmatprep.subr.mxu0 0.0
        %437 = vmatpush1.msra.mxu0 0.0
        %438 = vmatprep.subr.mxu0 0.0
        %439 = vmatpush1.msra.mxu0 0.0
        %440 = vmatprep.subr.mxu0 0.0
        %441 = vmatpush1.msra.mxu0 0.0
        %442 = vmatprep.subr.mxu0 0.0
        %443 = vmatpush1.msra.mxu0 0.0
        %444 = vmatprep.subr.mxu0 0.0
        %445 = vmatpush1.msra.mxu0 0.0
        %446 = vmatprep.subr.mxu0 0.0
        %447 = vmatpush1.msra.mxu0 0.0
        %448 = vmatprep.subr.mxu0 0.0
        %449 = vmatpush1.msra.mxu0 0.0
        %450 = vmatprep.subr.mxu0 0.0
        %451 = vmatpush1.msra.mxu0 0.0
        %452 = vmatprep.subr.mxu0 0.0
        %453 = vmatpush1.msra.mxu0 0.0
        %454 = vmatprep.subr.mxu0 0.0
        %455 = vmatpush1.msra.mxu0 0.0
        %456 = vmatprep.subr.mxu0 0.0
        %457 = vmatpush1.msra.mxu0 0.0
        %458 = vmatprep.subr.mxu0 0.0
        %459 = vmatpush1.msra.mxu0 0.0
        %460 = vmatprep.mubr.f32.mxu0 0.0
        %461 = vmatmul.mubr.f32.gmra.mrb[0].mxu0 %v391
        %v462 = vpop.f32.mrb[0].mxu0
        %v463 = vadd.f32 0.0, %v462
        %v464 = vpop.f32.mrb[0].mxu0
        %465 = vdwg.mxu0
        %v467 = vsel %vm389, %v383, 0
        %v469 = vsel %vm393, %v382, 0
        %471 = vmatprep.subr.mxu0 0.0
        %472 = vmatpush1.msra.mxu0 %v469
        %473 = vmatprep.subr.mxu0 0.0
        %474 = vmatpush1.msra.mxu0 0.0
        %475 = vmatprep.subr.mxu0 0.0
        %476 = vmatpush1.msra.mxu0 0.0
        %477 = vmatprep.subr.mxu0 0.0
        %478 = vmatpush1.msra.mxu0 0.0
        %479 = vmatprep.subr.mxu0 0.0
        %480 = vmatpush1.msra.mxu0 0.0
        %481 = vmatprep.subr.mxu0 0.0
        %482 = vmatpush1.msra.mxu0 0.0
        %483 = vmatprep.subr.mxu0 0.0
        %484 = vmatpush1.msra.mxu0 0.0
        %485 = vmatprep.subr.mxu0 0.0
        %486 = vmatpush1.msra.mxu0 0.0
        %487 = vmatprep.subr.mxu0 0.0
        %488 = vmatpush1.msra.mxu0 0.0
        %489 = vmatprep.subr.mxu0 0.0
        %490 = vmatpush1.msra.mxu0 0.0
        %491 = vmatprep.subr.mxu0 0.0
        %492 = vmatpush1.msra.mxu0 0.0
        %493 = vmatprep.subr.mxu0 0.0
        %494 = vmatpush1.msra.mxu0 0.0
        %495 = vmatprep.subr.mxu0 0.0
        %496 = vmatpush1.msra.mxu0 0.0
        %497 = vmatprep.subr.mxu0 0.0
        %498 = vmatpush1.msra.mxu0 0.0
        %499 = vmatprep.subr.mxu0 0.0
        %500 = vmatpush1.msra.mxu0 0.0
        %501 = vmatprep.subr.mxu0 0.0
        %502 = vmatpush1.msra.mxu0 0.0
        %503 = vmatprep.subr.mxu0 0.0
        %504 = vmatpush1.msra.mxu0 0.0
        %505 = vmatprep.subr.mxu0 0.0
        %506 = vmatpush1.msra.mxu0 0.0
        %507 = vmatprep.subr.mxu0 0.0
        %508 = vmatpush1.msra.mxu0 0.0
        %509 = vmatprep.subr.mxu0 0.0
        %510 = vmatpush1.msra.mxu0 0.0
        %511 = vmatprep.subr.mxu0 0.0
        %512 = vmatpush1.msra.mxu0 0.0
        %513 = vmatprep.subr.mxu0 0.0
        %514 = vmatpush1.msra.mxu0 0.0
        %515 = vmatprep.subr.mxu0 0.0
        %516 = vmatpush1.msra.mxu0 0.0
        %517 = vmatprep.subr.mxu0 0.0
        %518 = vmatpush1.msra.mxu0 0.0
        %519 = vmatprep.subr.mxu0 0.0
        %520 = vmatpush1.msra.mxu0 0.0
        %521 = vmatprep.subr.mxu0 0.0
        %522 = vmatpush1.msra.mxu0 0.0
        %523 = vmatprep.subr.mxu0 0.0
        %524 = vmatpush1.msra.mxu0 0.0
        %525 = vmatprep.subr.mxu0 0.0
        %526 = vmatpush1.msra.mxu0 0.0
        %527 = vmatprep.subr.mxu0 0.0
        %528 = vmatpush1.msra.mxu0 0.0
        %529 = vmatprep.subr.mxu0 0.0
        %530 = vmatpush1.msra.mxu0 0.0
        %531 = vmatprep.subr.mxu0 0.0
        %532 = vmatpush1.msra.mxu0 0.0
        %533 = vmatprep.subr.mxu0 0.0
        %534 = vmatpush1.msra.mxu0 0.0
        %535 = vmatprep.mubr.f32.mxu0 0.0
        %536 = vmatmul.mubr.f32.gmra.mrb[0].mxu0 %v467
        %v537 = vpop.f32.mrb[0].mxu0
        %v538 = vadd.f32 %v463, %v537
        %v539 = vpop.f32.mrb[0].mxu0
        %540 = vdwg.mxu0
        %s541 = scalar_lea.vmem %s1, 16
        %v542 = vld [vmem:[%s541] sm:$0xff]
        %543 = vrot.lane.b32.xlu0 %v382, 126
        %v544 = vpop.permute.xlu0 %543
        %v546 = vsel %vm389, %v542, 0
        %v548 = vsel %vm393, %v544, 0
        %550 = vmatprep.subr.mxu0 0.0
        %551 = vmatpush1.msra.mxu0 %v548
        %552 = vmatprep.subr.mxu0 0.0
        %553 = vmatpush1.msra.mxu0 0.0
        %554 = vmatprep.subr.mxu0 0.0
        %555 = vmatpush1.msra.mxu0 0.0
        %556 = vmatprep.subr.mxu0 0.0
        %557 = vmatpush1.msra.mxu0 0.0
        %558 = vmatprep.subr.mxu0 0.0
        %559 = vmatpush1.msra.mxu0 0.0
        %560 = vmatprep.subr.mxu0 0.0
        %561 = vmatpush1.msra.mxu0 0.0
        %562 = vmatprep.subr.mxu0 0.0
        %563 = vmatpush1.msra.mxu0 0.0
        %564 = vmatprep.subr.mxu0 0.0
        %565 = vmatpush1.msra.mxu0 0.0
        %566 = vmatprep.subr.mxu0 0.0
        %567 = vmatpush1.msra.mxu0 0.0
        %568 = vmatprep.subr.mxu0 0.0
        %569 = vmatpush1.msra.mxu0 0.0
        %570 = vmatprep.subr.mxu0 0.0
        %571 = vmatpush1.msra.mxu0 0.0
        %572 = vmatprep.subr.mxu0 0.0
        %573 = vmatpush1.msra.mxu0 0.0
        %574 = vmatprep.subr.mxu0 0.0
        %575 = vmatpush1.msra.mxu0 0.0
        %576 = vmatprep.subr.mxu0 0.0
        %577 = vmatpush1.msra.mxu0 0.0
        %578 = vmatprep.subr.mxu0 0.0
        %579 = vmatpush1.msra.mxu0 0.0
        %580 = vmatprep.subr.mxu0 0.0
        %581 = vmatpush1.msra.mxu0 0.0
        %582 = vmatprep.subr.mxu0 0.0
        %583 = vmatpush1.msra.mxu0 0.0
        %584 = vmatprep.subr.mxu0 0.0
        %585 = vmatpush1.msra.mxu0 0.0
        %586 = vmatprep.subr.mxu0 0.0
        %587 = vmatpush1.msra.mxu0 0.0
        %588 = vmatprep.subr.mxu0 0.0
        %589 = vmatpush1.msra.mxu0 0.0
        %590 = vmatprep.subr.mxu0 0.0
        %591 = vmatpush1.msra.mxu0 0.0
        %592 = vmatprep.subr.mxu0 0.0
        %593 = vmatpush1.msra.mxu0 0.0
        %594 = vmatprep.subr.mxu0 0.0
        %595 = vmatpush1.msra.mxu0 0.0
        %596 = vmatprep.subr.mxu0 0.0
        %597 = vmatpush1.msra.mxu0 0.0
        %598 = vmatprep.subr.mxu0 0.0
        %599 = vmatpush1.msra.mxu0 0.0
        %600 = vmatprep.subr.mxu0 0.0
        %601 = vmatpush1.msra.mxu0 0.0
        %602 = vmatprep.subr.mxu0 0.0
        %603 = vmatpush1.msra.mxu0 0.0
        %604 = vmatprep.subr.mxu0 0.0
        %605 = vmatpush1.msra.mxu0 0.0
        %606 = vmatprep.subr.mxu0 0.0
        %607 = vmatpush1.msra.mxu0 0.0
        %608 = vmatprep.subr.mxu0 0.0
        %609 = vmatpush1.msra.mxu0 0.0
        %610 = vmatprep.subr.mxu0 0.0
        %611 = vmatpush1.msra.mxu0 0.0
        %612 = vmatprep.subr.mxu0 0.0
        %613 = vmatpush1.msra.mxu0 0.0
        %614 = vmatprep.mubr.f32.mxu0 0.0
        %615 = vmatmul.mubr.f32.gmra.mrb[0].mxu0 %v546
        %v616 = vpop.f32.mrb[0].mxu0
        %v617 = vadd.f32 0.0, %v616
        %v618 = vpop.f32.mrb[0].mxu0
        %619 = vdwg.mxu0
        %v620 = vadd.f32 %v538, %v617
        %v621 = vld [vmem:[%s2] sm:$0xff]
        %623 = vset.pattern.permute.xlu0 0
        %624 = vperm.xlu0 %623, %v621
        %v625 = vpop.permute.xlu0 %624
        %v627 = vadd.f32 %v620, %v625
        %v628 = vmul.f32 %v627, 0.5
        %v629 = vmul.f32 %v627, 0.044715
        %v630 = vmul.f32 %v629, %v627
        %v631 = vmul.f32 %v630, %v627
        %v632 = vadd.f32 %v627, %v631
        %v633 = vmul.f32 %v632, 0.7978846
        %v634 = vtanh.pop %v633
        %v635 = vadd.f32 %v634, 1.0
        %v636 = vmul.f32 %v628, %v635
        %v637 = vld [vmem:[%s3] sm:$0xff]
        %v638 = vld [vmem:[%s3 + $0x8] sm:$0xff]
        %s639 = scalar_lea.vmem %s3, 16
        %v640 = vld [vmem:[%s639] sm:$0xff]
        %v641 = vld [vmem:[%s639 + $0x8] sm:$0xff]
        %643 = vrot.lane.b32.xlu0 %v636, 126
        %v644 = vpop.permute.xlu0 %643
        %vm646 = vcmask 64512
        %v648 = vsel %vm646, %v640, 0
        %v651 = vsel %vm646, %v641, 0
        %653 = vmatprep.subr.mxu0 0.0
        %654 = vmatpush1.msra.mxu0 %v644
        %655 = vmatprep.subr.mxu0 0.0
        %656 = vmatpush1.msra.mxu0 0.0
        %657 = vmatprep.subr.mxu0 0.0
        %658 = vmatpush1.msra.mxu0 0.0
        %659 = vmatprep.subr.mxu0 0.0
        %660 = vmatpush1.msra.mxu0 0.0
        %661 = vmatprep.subr.mxu0 0.0
        %662 = vmatpush1.msra.mxu0 0.0
        %663 = vmatprep.subr.mxu0 0.0
        %664 = vmatpush1.msra.mxu0 0.0
        %665 = vmatprep.subr.mxu0 0.0
        %666 = vmatpush1.msra.mxu0 0.0
        %667 = vmatprep.subr.mxu0 0.0
        %668 = vmatpush1.msra.mxu0 0.0
        %669 = vmatprep.subr.mxu0 0.0
        %670 = vmatpush1.msra.mxu0 0.0
        %671 = vmatprep.subr.mxu0 0.0
        %672 = vmatpush1.msra.mxu0 0.0
        %673 = vmatprep.subr.mxu0 0.0
        %674 = vmatpush1.msra.mxu0 0.0
        %675 = vmatprep.subr.mxu0 0.0
        %676 = vmatpush1.msra.mxu0 0.0
        %677 = vmatprep.subr.mxu0 0.0
        %678 = vmatpush1.msra.mxu0 0.0
        %679 = vmatprep.subr.mxu0 0.0
        %680 = vmatpush1.msra.mxu0 0.0
        %681 = vmatprep.subr.mxu0 0.0
        %682 = vmatpush1.msra.mxu0 0.0
        %683 = vmatprep.subr.mxu0 0.0
        %684 = vmatpush1.msra.mxu0 0.0
        %685 = vmatprep.subr.mxu0 0.0
        %686 = vmatpush1.msra.mxu0 0.0
        %687 = vmatprep.subr.mxu0 0.0
        %688 = vmatpush1.msra.mxu0 0.0
        %689 = vmatprep.subr.mxu0 0.0
        %690 = vmatpush1.msra.mxu0 0.0
        %691 = vmatprep.subr.mxu0 0.0
        %692 = vmatpush1.msra.mxu0 0.0
        %693 = vmatprep.subr.mxu0 0.0
        %694 = vmatpush1.msra.mxu0 0.0
        %695 = vmatprep.subr.mxu0 0.0
        %696 = vmatpush1.msra.mxu0 0.0
        %697 = vmatprep.subr.mxu0 0.0
        %698 = vmatpush1.msra.mxu0 0.0
        %699 = vmatprep.subr.mxu0 0.0
        %700 = vmatpush1.msra.mxu0 0.0
        %701 = vmatprep.subr.mxu0 0.0
        %702 = vmatpush1.msra.mxu0 0.0
        %703 = vmatprep.subr.mxu0 0.0
        %704 = vmatpush1.msra.mxu0 0.0
        %705 = vmatprep.subr.mxu0 0.0
        %706 = vmatpush1.msra.mxu0 0.0
        %707 = vmatprep.subr.mxu0 0.0
        %708 = vmatpush1.msra.mxu0 0.0
        %709 = vmatprep.subr.mxu0 0.0
        %710 = vmatpush1.msra.mxu0 0.0
        %711 = vmatprep.subr.mxu0 0.0
        %712 = vmatpush1.msra.mxu0 0.0
        %713 = vmatprep.subr.mxu0 0.0
        %714 = vmatpush1.msra.mxu0 0.0
        %715 = vmatprep.subr.mxu0 0.0
        %716 = vmatpush1.msra.mxu0 0.0
        %717 = vmatprep.mubr.f32.mxu0 0.0
        %718 = vmatmul.mubr.f32.gmra.mrb[0].mxu0 %v648
        %v719 = vpop.f32.mrb[0].mxu0
        %v720 = vadd.f32 0.0, %v719
        %v721 = vpop.f32.mrb[0].mxu0
        %722 = vmatprep.mubr.f32.mxu0 0.0
        %723 = vmatmul.mubr.f32.gmra.mrb[0].mxu0 %v651
        %v724 = vpop.f32.mrb[0].mxu0
        %v725 = vadd.f32 0.0, %v724
        %v726 = vpop.f32.mrb[0].mxu0
        %727 = vdwg.mxu0
        %v729 = vsel %vm646, %v637, 0
        %v732 = vsel %vm646, %v638, 0
        %734 = vmatprep.subr.mxu0 0.0
        %735 = vmatpush1.msra.mxu0 %v636
        %736 = vmatprep.subr.mxu0 0.0
        %737 = vmatpush1.msra.mxu0 0.0
        %738 = vmatprep.subr.mxu0 0.0
        %739 = vmatpush1.msra.mxu0 0.0
        %740 = vmatprep.subr.mxu0 0.0
        %741 = vmatpush1.msra.mxu0 0.0
        %742 = vmatprep.subr.mxu0 0.0
        %743 = vmatpush1.msra.mxu0 0.0
        %744 = vmatprep.subr.mxu0 0.0
        %745 = vmatpush1.msra.mxu0 0.0
        %746 = vmatprep.subr.mxu0 0.0
        %747 = vmatpush1.msra.mxu0 0.0
        %748 = vmatprep.subr.mxu0 0.0
        %749 = vmatpush1.msra.mxu0 0.0
        %750 = vmatprep.subr.mxu0 0.0
        %751 = vmatpush1.msra.mxu0 0.0
        %752 = vmatprep.subr.mxu0 0.0
        %753 = vmatpush1.msra.mxu0 0.0
        %754 = vmatprep.subr.mxu0 0.0
        %755 = vmatpush1.msra.mxu0 0.0
        %756 = vmatprep.subr.mxu0 0.0
        %757 = vmatpush1.msra.mxu0 0.0
        %758 = vmatprep.subr.mxu0 0.0
        %759 = vmatpush1.msra.mxu0 0.0
        %760 = vmatprep.subr.mxu0 0.0
        %761 = vmatpush1.msra.mxu0 0.0
        %762 = vmatprep.subr.mxu0 0.0
        %763 = vmatpush1.msra.mxu0 0.0
        %764 = vmatprep.subr.mxu0 0.0
        %765 = vmatpush1.msra.mxu0 0.0
        %766 = vmatprep.subr.mxu0 0.0
        %767 = vmatpush1.msra.mxu0 0.0
        %768 = vmatprep.subr.mxu0 0.0
        %769 = vmatpush1.msra.mxu0 0.0
        %770 = vmatprep.subr.mxu0 0.0
        %771 = vmatpush1.msra.mxu0 0.0
        %772 = vmatprep.subr.mxu0 0.0
        %773 = vmatpush1.msra.mxu0 0.0
        %774 = vmatprep.subr.mxu0 0.0
        %775 = vmatpush1.msra.mxu0 0.0
        %776 = vmatprep.subr.mxu0 0.0
        %777 = vmatpush1.msra.mxu0 0.0
        %778 = vmatprep.subr.mxu0 0.0
        %779 = vmatpush1.msra.mxu0 0.0
        %780 = vmatprep.subr.mxu0 0.0
        %781 = vmatpush1.msra.mxu0 0.0
        %782 = vmatprep.subr.mxu0 0.0
        %783 = vmatpush1.msra.mxu0 0.0
        %784 = vmatprep.subr.mxu0 0.0
        %785 = vmatpush1.msra.mxu0 0.0
        %786 = vmatprep.subr.mxu0 0.0
        %787 = vmatpush1.msra.mxu0 0.0
        %788 = vmatprep.subr.mxu0 0.0
        %789 = vmatpush1.msra.mxu0 0.0
        %790 = vmatprep.subr.mxu0 0.0
        %791 = vmatpush1.msra.mxu0 0.0
        %792 = vmatprep.subr.mxu0 0.0
        %793 = vmatpush1.msra.mxu0 0.0
        %794 = vmatprep.subr.mxu0 0.0
        %795 = vmatpush1.msra.mxu0 0.0
        %796 = vmatprep.subr.mxu0 0.0
        %797 = vmatpush1.msra.mxu0 0.0
        %798 = vmatprep.mubr.f32.mxu0 0.0
        %799 = vmatmul.mubr.f32.gmra.mrb[0].mxu0 %v729
        %v800 = vpop.f32.mrb[0].mxu0
        %v801 = vadd.f32 %v720, %v800
        %v802 = vpop.f32.mrb[0].mxu0
        %803 = vmatprep.mubr.f32.mxu0 0.0
        %804 = vmatmul.mubr.f32.gmra.mrb[0].mxu0 %v732
        %v805 = vpop.f32.mrb[0].mxu0
        %v806 = vadd.f32 %v725, %v805
        %v807 = vpop.f32.mrb[0].mxu0
        %808 = vdwg.mxu0
        %s809 = scalar_lea.vmem %s3, 32
        %v810 = vld [vmem:[%s809] sm:$0xff]
        %v811 = vld [vmem:[%s809 + $0x8] sm:$0xff]
        %812 = vrot.lane.b32.xlu0 %v636, 124
        %v813 = vpop.permute.xlu0 %812
        %v816 = vsel %vm646, %v810, 0
        %v819 = vsel %vm646, %v811, 0
        %821 = vmatprep.subr.mxu0 0.0
        %822 = vmatpush1.msra.mxu0 %v813
        %823 = vmatprep.subr.mxu0 0.0
        %824 = vmatpush1.msra.mxu0 0.0
        %825 = vmatprep.subr.mxu0 0.0
        %826 = vmatpush1.msra.mxu0 0.0
        %827 = vmatprep.subr.mxu0 0.0
        %828 = vmatpush1.msra.mxu0 0.0
        %829 = vmatprep.subr.mxu0 0.0
        %830 = vmatpush1.msra.mxu0 0.0
        %831 = vmatprep.subr.mxu0 0.0
        %832 = vmatpush1.msra.mxu0 0.0
        %833 = vmatprep.subr.mxu0 0.0
        %834 = vmatpush1.msra.mxu0 0.0
        %835 = vmatprep.subr.mxu0 0.0
        %836 = vmatpush1.msra.mxu0 0.0
        %837 = vmatprep.subr.mxu0 0.0
        %838 = vmatpush1.msra.mxu0 0.0
        %839 = vmatprep.subr.mxu0 0.0
        %840 = vmatpush1.msra.mxu0 0.0
        %841 = vmatprep.subr.mxu0 0.0
        %842 = vmatpush1.msra.mxu0 0.0
        %843 = vmatprep.subr.mxu0 0.0
        %844 = vmatpush1.msra.mxu0 0.0
        %845 = vmatprep.subr.mxu0 0.0
        %846 = vmatpush1.msra.mxu0 0.0
        %847 = vmatprep.subr.mxu0 0.0
        %848 = vmatpush1.msra.mxu0 0.0
        %849 = vmatprep.subr.mxu0 0.0
        %850 = vmatpush1.msra.mxu0 0.0
        %851 = vmatprep.subr.mxu0 0.0
        %852 = vmatpush1.msra.mxu0 0.0
        %853 = vmatprep.subr.mxu0 0.0
        %854 = vmatpush1.msra.mxu0 0.0
        %855 = vmatprep.subr.mxu0 0.0
        %856 = vmatpush1.msra.mxu0 0.0
        %857 = vmatprep.subr.mxu0 0.0
        %858 = vmatpush1.msra.mxu0 0.0
        %859 = vmatprep.subr.mxu0 0.0
        %860 = vmatpush1.msra.mxu0 0.0
        %861 = vmatprep.subr.mxu0 0.0
        %862 = vmatpush1.msra.mxu0 0.0
        %863 = vmatprep.subr.mxu0 0.0
        %864 = vmatpush1.msra.mxu0 0.0
        %865 = vmatprep.subr.mxu0 0.0
        %866 = vmatpush1.msra.mxu0 0.0
        %867 = vmatprep.subr.mxu0 0.0
        %868 = vmatpush1.msra.mxu0 0.0
        %869 = vmatprep.subr.mxu0 0.0
        %870 = vmatpush1.msra.mxu0 0.0
        %871 = vmatprep.subr.mxu0 0.0
        %872 = vmatpush1.msra.mxu0 0.0
        %873 = vmatprep.subr.mxu0 0.0
        %874 = vmatpush1.msra.mxu0 0.0
        %875 = vmatprep.subr.mxu0 0.0
        %876 = vmatpush1.msra.mxu0 0.0
        %877 = vmatprep.subr.mxu0 0.0
        %878 = vmatpush1.msra.mxu0 0.0
        %879 = vmatprep.subr.mxu0 0.0
        %880 = vmatpush1.msra.mxu0 0.0
        %881 = vmatprep.subr.mxu0 0.0
        %882 = vmatpush1.msra.mxu0 0.0
        %883 = vmatprep.subr.mxu0 0.0
        %884 = vmatpush1.msra.mxu0 0.0
        %885 = vmatprep.mubr.f32.mxu0 0.0
        %886 = vmatmul.mubr.f32.gmra.mrb[0].mxu0 %v816
        %v887 = vpop.f32.mrb[0].mxu0
        %v888 = vadd.f32 0.0, %v887
        %v889 = vpop.f32.mrb[0].mxu0
        %890 = vmatprep.mubr.f32.mxu0 0.0
        %891 = vmatmul.mubr.f32.gmra.mrb[0].mxu0 %v819
        %v892 = vpop.f32.mrb[0].mxu0
        %v893 = vadd.f32 0.0, %v892
        %v894 = vpop.f32.mrb[0].mxu0
        %895 = vdwg.mxu0
        %v896 = vadd.f32 %v801, %v888
        %v897 = vadd.f32 %v806, %v893
        %v898 = vld [vmem:[%s4] sm:$0xff]
        %v899 = vld [vmem:[%s4 + $0x8] sm:$0xff]
        %901 = vset.pattern.permute.xlu0 0
        %902 = vperm.xlu0 %901, %v898
        %v903 = vpop.permute.xlu0 %902
        %906 = vset.pattern.permute.xlu0 0
        %907 = vperm.xlu0 %906, %v899
        %v908 = vpop.permute.xlu0 %907
        %v910 = vadd.f32 %v896, %v903
        %v911 = vadd.f32 %v897, %v908
        %v912 = vmul.f32 %v910, 0.5
        %v913 = vmul.f32 %v911, 0.5
        %v914 = vmul.f32 %v910, 0.044715
        %v915 = vmul.f32 %v911, 0.044715
        %v916 = vmul.f32 %v914, %v910
        %v917 = vmul.f32 %v915, %v911
        %v918 = vmul.f32 %v916, %v910
        %v919 = vmul.f32 %v917, %v911
        %v920 = vadd.f32 %v910, %v918
        %v921 = vadd.f32 %v911, %v919
        %v922 = vmul.f32 %v920, 0.7978846
        %v923 = vmul.f32 %v921, 0.7978846
        %v924 = vtanh.pop %v922
        %v925 = vtanh.pop %v923
        %v926 = vadd.f32 %v924, 1.0
        %v927 = vadd.f32 %v925, 1.0
        %v928 = vmul.f32 %v912, %v926
        %v929 = vmul.f32 %v913, %v927
        %v930 = vld [vmem:[%s5] sm:$0xff]
        %v931 = vld [vmem:[%s5 + $0x8] sm:$0xff]
        %v932 = vld [vmem:[%s5 + $0x10] sm:$0xff]
        %v933 = vld [vmem:[%s5 + $0x18] sm:$0xff]
        %s934 = scalar_lea.vmem %s5, 32
        %v935 = vld [vmem:[%s934] sm:$0xff]
        %v936 = vld [vmem:[%s934 + $0x8] sm:$0xff]
        %v937 = vld [vmem:[%s934 + $0x10] sm:$0xff]
        %v938 = vld [vmem:[%s934 + $0x18] sm:$0xff]
        %941 = vrot.lane.b32.xlu0 %v928, 124
        %v942 = vpop.permute.xlu0 %941
        %943 = vrot.lane.b32.xlu0 %v929, 124
        %v944 = vpop.permute.xlu0 %943
        %vm947 = vcmask 130048
        %v949 = vsel %vm947, %v935, 0
        %v952 = vsel %vm947, %v936, 0
        %v955 = vsel %vm947, %v937, 0
        %v958 = vsel %vm947, %v938, 0
        %960 = vmatprep.subr.mxu0 0.0
        %961 = vmatpush1.msra.mxu0 %v942
        %962 = vmatprep.subr.mxu0 0.0
        %963 = vmatpush1.msra.mxu0 %v944
        %964 = vmatprep.subr.mxu0 0.0
        %965 = vmatpush1.msra.mxu0 0.0
        %966 = vmatprep.subr.mxu0 0.0
        %967 = vmatpush1.msra.mxu0 0.0
        %968 = vmatprep.subr.mxu0 0.0
        %969 = vmatpush1.msra.mxu0 0.0
        %970 = vmatprep.subr.mxu0 0.0
        %971 = vmatpush1.msra.mxu0 0.0
        %972 = vmatprep.subr.mxu0 0.0
        %973 = vmatpush1.msra.mxu0 0.0
        %974 = vmatprep.subr.mxu0 0.0
        %975 = vmatpush1.msra.mxu0 0.0
        %976 = vmatprep.subr.mxu0 0.0
        %977 = vmatpush1.msra.mxu0 0.0
        %978 = vmatprep.subr.mxu0 0.0
        %979 = vmatpush1.msra.mxu0 0.0
        %980 = vmatprep.subr.mxu0 0.0
        %981 = vmatpush1.msra.mxu0 0.0
        %982 = vmatprep.subr.mxu0 0.0
        %983 = vmatpush1.msra.mxu0 0.0
        %984 = vmatprep.subr.mxu0 0.0
        %985 = vmatpush1.msra.mxu0 0.0
        %986 = vmatprep.subr.mxu0 0.0
        %987 = vmatpush1.msra.mxu0 0.0
        %988 = vmatprep.subr.mxu0 0.0
        %989 = vmatpush1.msra.mxu0 0.0
        %990 = vmatprep.subr.mxu0 0.0
        %991 = vmatpush1.msra.mxu0 0.0
        %992 = vmatprep.subr.mxu0 0.0
        %993 = vmatpush1.msra.mxu0 0.0
        %994 = vmatprep.subr.mxu0 0.0
        %995 = vmatpush1.msra.mxu0 0.0
        %996 = vmatprep.subr.mxu0 0.0
        %997 = vmatpush1.msra.mxu0 0.0
        %998 = vmatprep.subr.mxu0 0.0
        %999 = vmatpush1.msra.mxu0 0.0
        %1000 = vmatprep.subr.mxu0 0.0
        %1001 = vmatpush1.msra.mxu0 0.0
        %1002 = vmatprep.subr.mxu0 0.0
        %1003 = vmatpush1.msra.mxu0 0.0
        %1004 = vmatprep.subr.mxu0 0.0
        %1005 = vmatpush1.msra.mxu0 0.0
        %1006 = vmatprep.subr.mxu0 0.0
        %1007 = vmatpush1.msra.mxu0 0.0
        %1008 = vmatprep.subr.mxu0 0.0
        %1009 = vmatpush1.msra.mxu0 0.0
        %1010 = vmatprep.subr.mxu0 0.0
        %1011 = vmatpush1.msra.mxu0 0.0
        %1012 = vmatprep.subr.mxu0 0.0
        %1013 = vmatpush1.msra.mxu0 0.0
        %1014 = vmatprep.subr.mxu0 0.0
        %1015 = vmatpush1.msra.mxu0 0.0
        %1016 = vmatprep.subr.mxu0 0.0
        %1017 = vmatpush1.msra.mxu0 0.0
        %1018 = vmatprep.subr.mxu0 0.0
        %1019 = vmatpush1.msra.mxu0 0.0
        %1020 = vmatprep.subr.mxu0 0.0
        %1021 = vmatpush1.msra.mxu0 0.0
        %1022 = vmatprep.subr.mxu0 0.0
        %1023 = vmatpush1.msra.mxu0 0.0
        %1024 = vmatprep.mubr.f32.mxu0 0.0
        %1025 = vmatmul.mubr.f32.gmra.mrb[0].mxu0 %v949
        %v1026 = vpop.f32.mrb[0].mxu0
        %v1027 = vadd.f32 0.0, %v1026
        %v1028 = vpop.f32.mrb[0].mxu0
        %1029 = vmatprep.mubr.f32.mxu0 0.0
        %1030 = vmatmul.mubr.f32.gmra.mrb[0].mxu0 %v952
        %v1031 = vpop.f32.mrb[0].mxu0
        %v1032 = vadd.f32 0.0, %v1031
        %v1033 = vpop.f32.mrb[0].mxu0
        %1034 = vmatprep.mubr.f32.mxu0 0.0
        %1035 = vmatmul.mubr.f32.gmra.mrb[0].mxu0 %v955
        %v1036 = vpop.f32.mrb[0].mxu0
        %v1037 = vadd.f32 0.0, %v1036
        %v1038 = vpop.f32.mrb[0].mxu0
        %1039 = vmatprep.mubr.f32.mxu0 0.0
        %1040 = vmatmul.mubr.f32.gmra.mrb[0].mxu0 %v958
        %v1041 = vpop.f32.mrb[0].mxu0
        %v1042 = vadd.f32 0.0, %v1041
        %v1043 = vpop.f32.mrb[0].mxu0
        %1044 = vdwg.mxu0
        %v1046 = vsel %vm947, %v930, 0
        %v1049 = vsel %vm947, %v931, 0
        %v1052 = vsel %vm947, %v932, 0
        %v1055 = vsel %vm947, %v933, 0
        %1057 = vmatprep.subr.mxu0 0.0
        %1058 = vmatpush1.msra.mxu0 %v928
        %1059 = vmatprep.subr.mxu0 0.0
        %1060 = vmatpush1.msra.mxu0 %v929
        %1061 = vmatprep.subr.mxu0 0.0
        %1062 = vmatpush1.msra.mxu0 0.0
        %1063 = vmatprep.subr.mxu0 0.0
        %1064 = vmatpush1.msra.mxu0 0.0
        %1065 = vmatprep.subr.mxu0 0.0
        %1066 = vmatpush1.msra.mxu0 0.0
        %1067 = vmatprep.subr.mxu0 0.0
        %1068 = vmatpush1.msra.mxu0 0.0
        %1069 = vmatprep.subr.mxu0 0.0
        %1070 = vmatpush1.msra.mxu0 0.0
        %1071 = vmatprep.subr.mxu0 0.0
        %1072 = vmatpush1.msra.mxu0 0.0
        %1073 = vmatprep.subr.mxu0 0.0
        %1074 = vmatpush1.msra.mxu0 0.0
        %1075 = vmatprep.subr.mxu0 0.0
        %1076 = vmatpush1.msra.mxu0 0.0
        %1077 = vmatprep.subr.mxu0 0.0
        %1078 = vmatpush1.msra.mxu0 0.0
        %1079 = vmatprep.subr.mxu0 0.0
        %1080 = vmatpush1.msra.mxu0 0.0
        %1081 = vmatprep.subr.mxu0 0.0
        %1082 = vmatpush1.msra.mxu0 0.0
        %1083 = vmatprep.subr.mxu0 0.0
        %1084 = vmatpush1.msra.mxu0 0.0
        %1085 = vmatprep.subr.mxu0 0.0
        %1086 = vmatpush1.msra.mxu0 0.0
        %1087 = vmatprep.subr.mxu0 0.0
        %1088 = vmatpush1.msra.mxu0 0.0
        %1089 = vmatprep.subr.mxu0 0.0
        %1090 = vmatpush1.msra.mxu0 0.0
        %1091 = vmatprep.subr.mxu0 0.0
        %1092 = vmatpush1.msra.mxu0 0.0
        %1093 = vmatprep.subr.mxu0 0.0
        %1094 = vmatpush1.msra.mxu0 0.0
        %1095 = vmatprep.subr.mxu0 0.0
        %1096 = vmatpush1.msra.mxu0 0.0
        %1097 = vmatprep.subr.mxu0 0.0
        %1098 = vmatpush1.msra.mxu0 0.0
        %1099 = vmatprep.subr.mxu0 0.0
        %1100 = vmatpush1.msra.mxu0 0.0
        %1101 = vmatprep.subr.mxu0 0.0
        %1102 = vmatpush1.msra.mxu0 0.0
        %1103 = vmatprep.subr.mxu0 0.0
        %1104 = vmatpush1.msra.mxu0 0.0
        %1105 = vmatprep.subr.mxu0 0.0
        %1106 = vmatpush1.msra.mxu0 0.0
        %1107 = vmatprep.subr.mxu0 0.0
        %1108 = vmatpush1.msra.mxu0 0.0
        %1109 = vmatprep.subr.mxu0 0.0
        %1110 = vmatpush1.msra.mxu0 0.0
        %1111 = vmatprep.subr.mxu0 0.0
        %1112 = vmatpush1.msra.mxu0 0.0
        %1113 = vmatprep.subr.mxu0 0.0
        %1114 = vmatpush1.msra.mxu0 0.0
        %1115 = vmatprep.subr.mxu0 0.0
        %1116 = vmatpush1.msra.mxu0 0.0
        %1117 = vmatprep.subr.mxu0 0.0
        %1118 = vmatpush1.msra.mxu0 0.0
        %1119 = vmatprep.subr.mxu0 0.0
        %1120 = vmatpush1.msra.mxu0 0.0
        %1121 = vmatprep.mubr.f32.mxu0 0.0
        %1122 = vmatmul.mubr.f32.gmra.mrb[0].mxu0 %v1046
        %v1123 = vpop.f32.mrb[0].mxu0
        %v1124 = vadd.f32 %v1027, %v1123
        %v1125 = vpop.f32.mrb[0].mxu0
        %1126 = vmatprep.mubr.f32.mxu0 0.0
        %1127 = vmatmul.mubr.f32.gmra.mrb[0].mxu0 %v1049
        %v1128 = vpop.f32.mrb[0].mxu0
        %v1129 = vadd.f32 %v1032, %v1128
        %v1130 = vpop.f32.mrb[0].mxu0
        %1131 = vmatprep.mubr.f32.mxu0 0.0
        %1132 = vmatmul.mubr.f32.gmra.mrb[0].mxu0 %v1052
        %v1133 = vpop.f32.mrb[0].mxu0
        %v1134 = vadd.f32 %v1037, %v1133
        %v1135 = vpop.f32.mrb[0].mxu0
        %1136 = vmatprep.mubr.f32.mxu0 0.0
        %1137 = vmatmul.mubr.f32.gmra.mrb[0].mxu0 %v1055
        %v1138 = vpop.f32.mrb[0].mxu0
        %v1139 = vadd.f32 %v1042, %v1138
        %v1140 = vpop.f32.mrb[0].mxu0
        %1141 = vdwg.mxu0
        %s1142 = scalar_lea.vmem %s5, 64
        %v1143 = vld [vmem:[%s1142] sm:$0xff]
        %v1144 = vld [vmem:[%s1142 + $0x8] sm:$0xff]
        %v1145 = vld [vmem:[%s1142 + $0x10] sm:$0xff]
        %v1146 = vld [vmem:[%s1142 + $0x18] sm:$0xff]
        %1147 = vrot.lane.b32.xlu0 %v928, 120
        %v1148 = vpop.permute.xlu0 %1147
        %1149 = vrot.lane.b32.xlu0 %v929, 120
        %v1150 = vpop.permute.xlu0 %1149
        %v1154 = vsel %vm947, %v1143, 0
        %v1157 = vsel %vm947, %v1144, 0
        %v1160 = vsel %vm947, %v1145, 0
        %v1163 = vsel %vm947, %v1146, 0
        %1165 = vmatprep.subr.mxu0 0.0
        %1166 = vmatpush1.msra.mxu0 %v1148
        %1167 = vmatprep.subr.mxu0 0.0
        %1168 = vmatpush1.msra.mxu0 %v1150
        %1169 = vmatprep.subr.mxu0 0.0
        %1170 = vmatpush1.msra.mxu0 0.0
        %1171 = vmatprep.subr.mxu0 0.0
        %1172 = vmatpush1.msra.mxu0 0.0
        %1173 = vmatprep.subr.mxu0 0.0
        %1174 = vmatpush1.msra.mxu0 0.0
        %1175 = vmatprep.subr.mxu0 0.0
        %1176 = vmatpush1.msra.mxu0 0.0
        %1177 = vmatprep.subr.mxu0 0.0
        %1178 = vmatpush1.msra.mxu0 0.0
        %1179 = vmatprep.subr.mxu0 0.0
        %1180 = vmatpush1.msra.mxu0 0.0
        %1181 = vmatprep.subr.mxu0 0.0
        %1182 = vmatpush1.msra.mxu0 0.0
        %1183 = vmatprep.subr.mxu0 0.0
        %1184 = vmatpush1.msra.mxu0 0.0
        %1185 = vmatprep.subr.mxu0 0.0
        %1186 = vmatpush1.msra.mxu0 0.0
        %1187 = vmatprep.subr.mxu0 0.0
        %1188 = vmatpush1.msra.mxu0 0.0
        %1189 = vmatprep.subr.mxu0 0.0
        %1190 = vmatpush1.msra.mxu0 0.0
        %1191 = vmatprep.subr.mxu0 0.0
        %1192 = vmatpush1.msra.mxu0 0.0
        %1193 = vmatprep.subr.mxu0 0.0
        %1194 = vmatpush1.msra.mxu0 0.0
        %1195 = vmatprep.subr.mxu0 0.0
        %1196 = vmatpush1.msra.mxu0 0.0
        %1197 = vmatprep.subr.mxu0 0.0
        %1198 = vmatpush1.msra.mxu0 0.0
        %1199 = vmatprep.subr.mxu0 0.0
        %1200 = vmatpush1.msra.mxu0 0.0
        %1201 = vmatprep.subr.mxu0 0.0
        %1202 = vmatpush1.msra.mxu0 0.0
        %1203 = vmatprep.subr.mxu0 0.0
        %1204 = vmatpush1.msra.mxu0 0.0
        %1205 = vmatprep.subr.mxu0 0.0
        %1206 = vmatpush1.msra.mxu0 0.0
        %1207 = vmatprep.subr.mxu0 0.0
        %1208 = vmatpush1.msra.mxu0 0.0
        %1209 = vmatprep.subr.mxu0 0.0
        %1210 = vmatpush1.msra.mxu0 0.0
        %1211 = vmatprep.subr.mxu0 0.0
        %1212 = vmatpush1.msra.mxu0 0.0
        %1213 = vmatprep.subr.mxu0 0.0
        %1214 = vmatpush1.msra.mxu0 0.0
        %1215 = vmatprep.subr.mxu0 0.0
        %1216 = vmatpush1.msra.mxu0 0.0
        %1217 = vmatprep.subr.mxu0 0.0
        %1218 = vmatpush1.msra.mxu0 0.0
        %1219 = vmatprep.subr.mxu0 0.0
        %1220 = vmatpush1.msra.mxu0 0.0
        %1221 = vmatprep.subr.mxu0 0.0
        %1222 = vmatpush1.msra.mxu0 0.0
        %1223 = vmatprep.subr.mxu0 0.0
        %1224 = vmatpush1.msra.mxu0 0.0
        %1225 = vmatprep.subr.mxu0 0.0
        %1226 = vmatpush1.msra.mxu0 0.0
        %1227 = vmatprep.subr.mxu0 0.0
        %1228 = vmatpush1.msra.mxu0 0.0
        %1229 = vmatprep.mubr.f32.mxu0 0.0
        %1230 = vmatmul.mubr.f32.gmra.mrb[0].mxu0 %v1154
        %v1231 = vpop.f32.mrb[0].mxu0
        %v1232 = vadd.f32 0.0, %v1231
        %v1233 = vpop.f32.mrb[0].mxu0
        %1234 = vmatprep.mubr.f32.mxu0 0.0
        %1235 = vmatmul.mubr.f32.gmra.mrb[0].mxu0 %v1157
        %v1236 = vpop.f32.mrb[0].mxu0
        %v1237 = vadd.f32 0.0, %v1236
        %v1238 = vpop.f32.mrb[0].mxu0
        %1239 = vmatprep.mubr.f32.mxu0 0.0
        %1240 = vmatmul.mubr.f32.gmra.mrb[0].mxu0 %v1160
        %v1241 = vpop.f32.mrb[0].mxu0
        %v1242 = vadd.f32 0.0, %v1241
        %v1243 = vpop.f32.mrb[0].mxu0
        %1244 = vmatprep.mubr.f32.mxu0 0.0
        %1245 = vmatmul.mubr.f32.gmra.mrb[0].mxu0 %v1163
        %v1246 = vpop.f32.mrb[0].mxu0
        %v1247 = vadd.f32 0.0, %v1246
        %v1248 = vpop.f32.mrb[0].mxu0
        %1249 = vdwg.mxu0
        %v1250 = vadd.f32 %v1124, %v1232
        %v1251 = vadd.f32 %v1129, %v1237
        %v1252 = vadd.f32 %v1134, %v1242
        %v1253 = vadd.f32 %v1139, %v1247
        %v1254 = vld [vmem:[%s6] sm:$0xff]
        %v1255 = vld [vmem:[%s6 + $0x8] sm:$0xff]
        %v1256 = vld [vmem:[%s6 + $0x10] sm:$0xff]
        %v1257 = vld [vmem:[%s6 + $0x18] sm:$0xff]
        %1259 = vset.pattern.permute.xlu0 0
        %1260 = vperm.xlu0 %1259, %v1254
        %v1261 = vpop.permute.xlu0 %1260
        %1264 = vset.pattern.permute.xlu0 0
        %1265 = vperm.xlu0 %1264, %v1255
        %v1266 = vpop.permute.xlu0 %1265
        %1269 = vset.pattern.permute.xlu0 0
        %1270 = vperm.xlu0 %1269, %v1256
        %v1271 = vpop.permute.xlu0 %1270
        %1274 = vset.pattern.permute.xlu0 0
        %1275 = vperm.xlu0 %1274, %v1257
        %v1276 = vpop.permute.xlu0 %1275
        %v1278 = vadd.f32 %v1250, %v1261
        %v1279 = vadd.f32 %v1251, %v1266
        %v1280 = vadd.f32 %v1252, %v1271
        %v1281 = vadd.f32 %v1253, %v1276
        %v1282 = vmul.f32 %v1278, 0.5
        %v1283 = vmul.f32 %v1279, 0.5
        %v1284 = vmul.f32 %v1280, 0.5
        %v1285 = vmul.f32 %v1281, 0.5
        %v1286 = vmul.f32 %v1278, 0.044715
        %v1287 = vmul.f32 %v1279, 0.044715
        %v1288 = vmul.f32 %v1280, 0.044715
        %v1289 = vmul.f32 %v1281, 0.044715
        %v1290 = vmul.f32 %v1286, %v1278
        %v1291 = vmul.f32 %v1287, %v1279
        %v1292 = vmul.f32 %v1288, %v1280
        %v1293 = vmul.f32 %v1289, %v1281
        %v1294 = vmul.f32 %v1290, %v1278
        %v1295 = vmul.f32 %v1291, %v1279
        %v1296 = vmul.f32 %v1292, %v1280
        %v1297 = vmul.f32 %v1293, %v1281
        %v1298 = vadd.f32 %v1278, %v1294
        %v1299 = vadd.f32 %v1279, %v1295
        %v1300 = vadd.f32 %v1280, %v1296
        %v1301 = vadd.f32 %v1281, %v1297
        %v1302 = vmul.f32 %v1298, 0.7978846
        %v1303 = vmul.f32 %v1299, 0.7978846
        %v1304 = vmul.f32 %v1300, 0.7978846
        %v1305 = vmul.f32 %v1301, 0.7978846
        %v1306 = vtanh.pop %v1302
        %v1307 = vtanh.pop %v1303
        %v1308 = vtanh.pop %v1304
        %v1309 = vtanh.pop %v1305
        %v1310 = vadd.f32 %v1306, 1.0
        %v1311 = vadd.f32 %v1307, 1.0
        %v1312 = vadd.f32 %v1308, 1.0
        %v1313 = vadd.f32 %v1309, 1.0
        %v1314 = vmul.f32 %v1282, %v1310
        %v1315 = vmul.f32 %v1283, %v1311
        %v1316 = vmul.f32 %v1284, %v1312
        %v1317 = vmul.f32 %v1285, %v1313
        %v1318 = vld [vmem:[%s7] sm:$0xff]
        %v1319 = vld [vmem:[%s7 + $0x8] sm:$0xff]
        %v1320 = vld [vmem:[%s7 + $0x10] sm:$0xff]
        %v1321 = vld [vmem:[%s7 + $0x18] sm:$0xff]
        %v1322 = vld [vmem:[%s7 + $0x20] sm:$0xff]
        %v1323 = vld [vmem:[%s7 + $0x28] sm:$0xff]
        %v1324 = vld [vmem:[%s7 + $0x30] sm:$0xff]
        %v1325 = vld [vmem:[%s7 + $0x38] sm:$0xff]
        %s1326 = scalar_lea.vmem %s7, 64
        %v1327 = vld [vmem:[%s1326] sm:$0xff]
        %v1328 = vld [vmem:[%s1326 + $0x8] sm:$0xff]
        %v1329 = vld [vmem:[%s1326 + $0x10] sm:$0xff]
        %v1330 = vld [vmem:[%s1326 + $0x18] sm:$0xff]
        %v1331 = vld [vmem:[%s1326 + $0x20] sm:$0xff]
        %v1332 = vld [vmem:[%s1326 + $0x28] sm:$0xff]
        %v1333 = vld [vmem:[%s1326 + $0x30] sm:$0xff]
        %v1334 = vld [vmem:[%s1326 + $0x38] sm:$0xff]
        %1339 = vrot.lane.b32.xlu0 %v1314, 120
        %v1340 = vpop.permute.xlu0 %1339
        %1341 = vrot.lane.b32.xlu0 %v1315, 120
        %v1342 = vpop.permute.xlu0 %1341
        %1343 = vrot.lane.b32.xlu0 %v1316, 120
        %v1344 = vpop.permute.xlu0 %1343
        %1345 = vrot.lane.b32.xlu0 %v1317, 120
        %v1346 = vpop.permute.xlu0 %1345
        %vm1351 = vcmask 261120
        %v1353 = vsel %vm1351, %v1327, 0
        %v1356 = vsel %vm1351, %v1328, 0
        %v1359 = vsel %vm1351, %v1329, 0
        %v1362 = vsel %vm1351, %v1330, 0
        %v1365 = vsel %vm1351, %v1331, 0
        %v1368 = vsel %vm1351, %v1332, 0
        %v1371 = vsel %vm1351, %v1333, 0
        %v1374 = vsel %vm1351, %v1334, 0
        %1376 = vmatprep.subr.mxu0 0.0
        %1377 = vmatpush1.msra.mxu0 %v1340
        %1378 = vmatprep.subr.mxu0 0.0
        %1379 = vmatpush1.msra.mxu0 %v1342
        %1380 = vmatprep.subr.mxu0 0.0
        %1381 = vmatpush1.msra.mxu0 %v1344
        %1382 = vmatprep.subr.mxu0 0.0
        %1383 = vmatpush1.msra.mxu0 %v1346
        %1384 = vmatprep.subr.mxu0 0.0
        %1385 = vmatpush1.msra.mxu0 0.0
        %1386 = vmatprep.subr.mxu0 0.0
        %1387 = vmatpush1.msra.mxu0 0.0
        %1388 = vmatprep.subr.mxu0 0.0
        %1389 = vmatpush1.msra.mxu0 0.0
        %1390 = vmatprep.subr.mxu0 0.0
        %1391 = vmatpush1.msra.mxu0 0.0
        %1392 = vmatprep.subr.mxu0 0.0
        %1393 = vmatpush1.msra.mxu0 0.0
        %1394 = vmatprep.subr.mxu0 0.0
        %1395 = vmatpush1.msra.mxu0 0.0
        %1396 = vmatprep.subr.mxu0 0.0
        %1397 = vmatpush1.msra.mxu0 0.0
        %1398 = vmatprep.subr.mxu0 0.0
        %1399 = vmatpush1.msra.mxu0 0.0
        %1400 = vmatprep.subr.mxu0 0.0
        %1401 = vmatpush1.msra.mxu0 0.0
        %1402 = vmatprep.subr.mxu0 0.0
        %1403 = vmatpush1.msra.mxu0 0.0
        %1404 = vmatprep.subr.mxu0 0.0
        %1405 = vmatpush1.msra.mxu0 0.0
        %1406 = vmatprep.subr.mxu0 0.0
        %1407 = vmatpush1.msra.mxu0 0.0
        %1408 = vmatprep.subr.mxu0 0.0
        %1409 = vmatpush1.msra.mxu0 0.0
        %1410 = vmatprep.subr.mxu0 0.0
        %1411 = vmatpush1.msra.mxu0 0.0
        %1412 = vmatprep.subr.mxu0 0.0
        %1413 = vmatpush1.msra.mxu0 0.0
        %1414 = vmatprep.subr.mxu0 0.0
        %1415 = vmatpush1.msra.mxu0 0.0
        %1416 = vmatprep.subr.mxu0 0.0
        %1417 = vmatpush1.msra.mxu0 0.0
        %1418 = vmatprep.subr.mxu0 0.0
        %1419 = vmatpush1.msra.mxu0 0.0
        %1420 = vmatprep.subr.mxu0 0.0
        %1421 = vmatpush1.msra.mxu0 0.0
        %1422 = vmatprep.subr.mxu0 0.0
        %1423 = vmatpush1.msra.mxu0 0.0
        %1424 = vmatprep.subr.mxu0 0.0
        %1425 = vmatpush1.msra.mxu0 0.0
        %1426 = vmatprep.subr.mxu0 0.0
        %1427 = vmatpush1.msra.mxu0 0.0
        %1428 = vmatprep.subr.mxu0 0.0
        %1429 = vmatpush1.msra.mxu0 0.0
        %1430 = vmatprep.subr.mxu0 0.0
        %1431 = vmatpush1.msra.mxu0 0.0
        %1432 = vmatprep.subr.mxu0 0.0
        %1433 = vmatpush1.msra.mxu0 0.0
        %1434 = vmatprep.subr.mxu0 0.0
        %1435 = vmatpush1.msra.mxu0 0.0
        %1436 = vmatprep.subr.mxu0 0.0
        %1437 = vmatpush1.msra.mxu0 0.0
        %1438 = vmatprep.subr.mxu0 0.0
        %1439 = vmatpush1.msra.mxu0 0.0
        %1440 = vmatprep.mubr.f32.mxu0 0.0
        %1441 = vmatmul.mubr.f32.gmra.mrb[0].mxu0 %v1353
        %v1442 = vpop.f32.mrb[0].mxu0
        %v1443 = vadd.f32 0.0, %v1442
        %v1444 = vpop.f32.mrb[0].mxu0
        %1445 = vmatprep.mubr.f32.mxu0 0.0
        %1446 = vmatmul.mubr.f32.gmra.mrb[0].mxu0 %v1356
        %v1447 = vpop.f32.mrb[0].mxu0
        %v1448 = vadd.f32 0.0, %v1447
        %v1449 = vpop.f32.mrb[0].mxu0
        %1450 = vmatprep.mubr.f32.mxu0 0.0
        %1451 = vmatmul.mubr.f32.gmra.mrb[0].mxu0 %v1359
        %v1452 = vpop.f32.mrb[0].mxu0
        %v1453 = vadd.f32 0.0, %v1452
        %v1454 = vpop.f32.mrb[0].mxu0
        %1455 = vmatprep.mubr.f32.mxu0 0.0
        %1456 = vmatmul.mubr.f32.gmra.mrb[0].mxu0 %v1362
        %v1457 = vpop.f32.mrb[0].mxu0
        %v1458 = vadd.f32 0.0, %v1457
        %v1459 = vpop.f32.mrb[0].mxu0
        %1460 = vmatprep.mubr.f32.mxu0 0.0
        %1461 = vmatmul.mubr.f32.gmra.mrb[0].mxu0 %v1365
        %v1462 = vpop.f32.mrb[0].mxu0
        %v1463 = vadd.f32 0.0, %v1462
        %v1464 = vpop.f32.mrb[0].mxu0
        %1465 = vmatprep.mubr.f32.mxu0 0.0
        %1466 = vmatmul.mubr.f32.gmra.mrb[0].mxu0 %v1368
        %v1467 = vpop.f32.mrb[0].mxu0
        %v1468 = vadd.f32 0.0, %v1467
        %v1469 = vpop.f32.mrb[0].mxu0
        %1470 = vmatprep.mubr.f32.mxu0 0.0
        %1471 = vmatmul.mubr.f32.gmra.mrb[0].mxu0 %v1371
        %v1472 = vpop.f32.mrb[0].mxu0
        %v1473 = vadd.f32 0.0, %v1472
        %v1474 = vpop.f32.mrb[0].mxu0
        %1475 = vmatprep.mubr.f32.mxu0 0.0
        %1476 = vmatmul.mubr.f32.gmra.mrb[0].mxu0 %v1374
        %v1477 = vpop.f32.mrb[0].mxu0
        %v1478 = vadd.f32 0.0, %v1477
        %v1479 = vpop.f32.mrb[0].mxu0
        %1480 = vdwg.mxu0
        %v1482 = vsel %vm1351, %v1318, 0
        %v1485 = vsel %vm1351, %v1319, 0
        %v1488 = vsel %vm1351, %v1320, 0
        %v1491 = vsel %vm1351, %v1321, 0
        %v1494 = vsel %vm1351, %v1322, 0
        %v1497 = vsel %vm1351, %v1323, 0
        %v1500 = vsel %vm1351, %v1324, 0
        %v1503 = vsel %vm1351, %v1325, 0
        %1505 = vmatprep.subr.mxu0 0.0
        %1506 = vmatpush1.msra.mxu0 %v1314
        %1507 = vmatprep.subr.mxu0 0.0
        %1508 = vmatpush1.msra.mxu0 %v1315
        %1509 = vmatprep.subr.mxu0 0.0
        %1510 = vmatpush1.msra.mxu0 %v1316
        %1511 = vmatprep.subr.mxu0 0.0
        %1512 = vmatpush1.msra.mxu0 %v1317
        %1513 = vmatprep.subr.mxu0 0.0
        %1514 = vmatpush1.msra.mxu0 0.0
        %1515 = vmatprep.subr.mxu0 0.0
        %1516 = vmatpush1.msra.mxu0 0.0
        %1517 = vmatprep.subr.mxu0 0.0
        %1518 = vmatpush1.msra.mxu0 0.0
        %1519 = vmatprep.subr.mxu0 0.0
        %1520 = vmatpush1.msra.mxu0 0.0
        %1521 = vmatprep.subr.mxu0 0.0
        %1522 = vmatpush1.msra.mxu0 0.0
        %1523 = vmatprep.subr.mxu0 0.0
        %1524 = vmatpush1.msra.mxu0 0.0
        %1525 = vmatprep.subr.mxu0 0.0
        %1526 = vmatpush1.msra.mxu0 0.0
        %1527 = vmatprep.subr.mxu0 0.0
        %1528 = vmatpush1.msra.mxu0 0.0
        %1529 = vmatprep.subr.mxu0 0.0
        %1530 = vmatpush1.msra.mxu0 0.0
        %1531 = vmatprep.subr.mxu0 0.0
        %1532 = vmatpush1.msra.mxu0 0.0
        %1533 = vmatprep.subr.mxu0 0.0
        %1534 = vmatpush1.msra.mxu0 0.0
        %1535 = vmatprep.subr.mxu0 0.0
        %1536 = vmatpush1.msra.mxu0 0.0
        %1537 = vmatprep.subr.mxu0 0.0
        %1538 = vmatpush1.msra.mxu0 0.0
        %1539 = vmatprep.subr.mxu0 0.0
        %1540 = vmatpush1.msra.mxu0 0.0
        %1541 = vmatprep.subr.mxu0 0.0
        %1542 = vmatpush1.msra.mxu0 0.0
        %1543 = vmatprep.subr.mxu0 0.0
        %1544 = vmatpush1.msra.mxu0 0.0
        %1545 = vmatprep.subr.mxu0 0.0
        %1546 = vmatpush1.msra.mxu0 0.0
        %1547 = vmatprep.subr.mxu0 0.0
        %1548 = vmatpush1.msra.mxu0 0.0
        %1549 = vmatprep.subr.mxu0 0.0
        %1550 = vmatpush1.msra.mxu0 0.0
        %1551 = vmatprep.subr.mxu0 0.0
        %1552 = vmatpush1.msra.mxu0 0.0
        %1553 = vmatprep.subr.mxu0 0.0
        %1554 = vmatpush1.msra.mxu0 0.0
        %1555 = vmatprep.subr.mxu0 0.0
        %1556 = vmatpush1.msra.mxu0 0.0
        %1557 = vmatprep.subr.mxu0 0.0
        %1558 = vmatpush1.msra.mxu0 0.0
        %1559 = vmatprep.subr.mxu0 0.0
        %1560 = vmatpush1.msra.mxu0 0.0
        %1561 = vmatprep.subr.mxu0 0.0
        %1562 = vmatpush1.msra.mxu0 0.0
        %1563 = vmatprep.subr.mxu0 0.0
        %1564 = vmatpush1.msra.mxu0 0.0
        %1565 = vmatprep.subr.mxu0 0.0
        %1566 = vmatpush1.msra.mxu0 0.0
        %1567 = vmatprep.subr.mxu0 0.0
        %1568 = vmatpush1.msra.mxu0 0.0
        %1569 = vmatprep.mubr.f32.mxu0 0.0
        %1570 = vmatmul.mubr.f32.gmra.mrb[0].mxu0 %v1482
        %v1571 = vpop.f32.mrb[0].mxu0
        %v1572 = vadd.f32 %v1443, %v1571
        %v1573 = vpop.f32.mrb[0].mxu0
        %1574 = vmatprep.mubr.f32.mxu0 0.0
        %1575 = vmatmul.mubr.f32.gmra.mrb[0].mxu0 %v1485
        %v1576 = vpop.f32.mrb[0].mxu0
        %v1577 = vadd.f32 %v1448, %v1576
        %v1578 = vpop.f32.mrb[0].mxu0
        %1579 = vmatprep.mubr.f32.mxu0 0.0
        %1580 = vmatmul.mubr.f32.gmra.mrb[0].mxu0 %v1488
        %v1581 = vpop.f32.mrb[0].mxu0
        %v1582 = vadd.f32 %v1453, %v1581
        %v1583 = vpop.f32.mrb[0].mxu0
        %1584 = vmatprep.mubr.f32.mxu0 0.0
        %1585 = vmatmul.mubr.f32.gmra.mrb[0].mxu0 %v1491
        %v1586 = vpop.f32.mrb[0].mxu0
        %v1587 = vadd.f32 %v1458, %v1586
        %v1588 = vpop.f32.mrb[0].mxu0
        %1589 = vmatprep.mubr.f32.mxu0 0.0
        %1590 = vmatmul.mubr.f32.gmra.mrb[0].mxu0 %v1494
        %v1591 = vpop.f32.mrb[0].mxu0
        %v1592 = vadd.f32 %v1463, %v1591
        %v1593 = vpop.f32.mrb[0].mxu0
        %1594 = vmatprep.mubr.f32.mxu0 0.0
        %1595 = vmatmul.mubr.f32.gmra.mrb[0].mxu0 %v1497
        %v1596 = vpop.f32.mrb[0].mxu0
        %v1597 = vadd.f32 %v1468, %v1596
        %v1598 = vpop.f32.mrb[0].mxu0
        %1599 = vmatprep.mubr.f32.mxu0 0.0
        %1600 = vmatmul.mubr.f32.gmra.mrb[0].mxu0 %v1500
        %v1601 = vpop.f32.mrb[0].mxu0
        %v1602 = vadd.f32 %v1473, %v1601
        %v1603 = vpop.f32.mrb[0].mxu0
        %1604 = vmatprep.mubr.f32.mxu0 0.0
        %1605 = vmatmul.mubr.f32.gmra.mrb[0].mxu0 %v1503
        %v1606 = vpop.f32.mrb[0].mxu0
        %v1607 = vadd.f32 %v1478, %v1606
        %v1608 = vpop.f32.mrb[0].mxu0
        %1609 = vdwg.mxu0
        %s1610 = scalar_lea.vmem %s7, 128
        %v1611 = vld [vmem:[%s1610] sm:$0xff]
        %v1612 = vld [vmem:[%s1610 + $0x8] sm:$0xff]
        %v1613 = vld [vmem:[%s1610 + $0x10] sm:$0xff]
        %v1614 = vld [vmem:[%s1610 + $0x18] sm:$0xff]
        %v1615 = vld [vmem:[%s1610 + $0x20] sm:$0xff]
        %v1616 = vld [vmem:[%s1610 + $0x28] sm:$0xff]
        %v1617 = vld [vmem:[%s1610 + $0x30] sm:$0xff]
        %v1618 = vld [vmem:[%s1610 + $0x38] sm:$0xff]
        %1619 = vrot.lane.b32.xlu0 %v1314, 112
        %v1620 = vpop.permute.xlu0 %1619
        %1621 = vrot.lane.b32.xlu0 %v1315, 112
        %v1622 = vpop.permute.xlu0 %1621
        %1623 = vrot.lane.b32.xlu0 %v1316, 112
        %v1624 = vpop.permute.xlu0 %1623
        %1625 = vrot.lane.b32.xlu0 %v1317, 112
        %v1626 = vpop.permute.xlu0 %1625
        %v1632 = vsel %vm1351, %v1611, 0
        %v1635 = vsel %vm1351, %v1612, 0
        %v1638 = vsel %vm1351, %v1613, 0
        %v1641 = vsel %vm1351, %v1614, 0
        %v1644 = vsel %vm1351, %v1615, 0
        %v1647 = vsel %vm1351, %v1616, 0
        %v1650 = vsel %vm1351, %v1617, 0
        %v1653 = vsel %vm1351, %v1618, 0
        %1655 = vmatprep.subr.mxu0 0.0
        %1656 = vmatpush1.msra.mxu0 %v1620
        %1657 = vmatprep.subr.mxu0 0.0
        %1658 = vmatpush1.msra.mxu0 %v1622
        %1659 = vmatprep.subr.mxu0 0.0
        %1660 = vmatpush1.msra.mxu0 %v1624
        %1661 = vmatprep.subr.mxu0 0.0
        %1662 = vmatpush1.msra.mxu0 %v1626
        %1663 = vmatprep.subr.mxu0 0.0
        %1664 = vmatpush1.msra.mxu0 0.0
        %1665 = vmatprep.subr.mxu0 0.0
        %1666 = vmatpush1.msra.mxu0 0.0
        %1667 = vmatprep.subr.mxu0 0.0
        %1668 = vmatpush1.msra.mxu0 0.0
        %1669 = vmatprep.subr.mxu0 0.0
        %1670 = vmatpush1.msra.mxu0 0.0
        %1671 = vmatprep.subr.mxu0 0.0
        %1672 = vmatpush1.msra.mxu0 0.0
        %1673 = vmatprep.subr.mxu0 0.0
        %1674 = vmatpush1.msra.mxu0 0.0
        %1675 = vmatprep.subr.mxu0 0.0
        %1676 = vmatpush1.msra.mxu0 0.0
        %1677 = vmatprep.subr.mxu0 0.0
        %1678 = vmatpush1.msra.mxu0 0.0
        %1679 = vmatprep.subr.mxu0 0.0
        %1680 = vmatpush1.msra.mxu0 0.0
        %1681 = vmatprep.subr.mxu0 0.0
        %1682 = vmatpush1.msra.mxu0 0.0
        %1683 = vmatprep.subr.mxu0 0.0
        %1684 = vmatpush1.msra.mxu0 0.0
        %1685 = vmatprep.subr.mxu0 0.0
        %1686 = vmatpush1.msra.mxu0 0.0
        %1687 = vmatprep.subr.mxu0 0.0
        %1688 = vmatpush1.msra.mxu0 0.0
        %1689 = vmatprep.subr.mxu0 0.0
        %1690 = vmatpush1.msra.mxu0 0.0
        %1691 = vmatprep.subr.mxu0 0.0
        %1692 = vmatpush1.msra.mxu0 0.0
        %1693 = vmatprep.subr.mxu0 0.0
        %1694 = vmatpush1.msra.mxu0 0.0
        %1695 = vmatprep.subr.mxu0 0.0
        %1696 = vmatpush1.msra.mxu0 0.0
        %1697 = vmatprep.subr.mxu0 0.0
        %1698 = vmatpush1.msra.mxu0 0.0
        %1699 = vmatprep.subr.mxu0 0.0
        %1700 = vmatpush1.msra.mxu0 0.0
        %1701 = vmatprep.subr.mxu0 0.0
        %1702 = vmatpush1.msra.mxu0 0.0
        %1703 = vmatprep.subr.mxu0 0.0
        %1704 = vmatpush1.msra.mxu0 0.0
        %1705 = vmatprep.subr.mxu0 0.0
        %1706 = vmatpush1.msra.mxu0 0.0
        %1707 = vmatprep.subr.mxu0 0.0
        %1708 = vmatpush1.msra.mxu0 0.0
        %1709 = vmatprep.subr.mxu0 0.0
        %1710 = vmatpush1.msra.mxu0 0.0
        %1711 = vmatprep.subr.mxu0 0.0
        %1712 = vmatpush1.msra.mxu0 0.0
        %1713 = vmatprep.subr.mxu0 0.0
        %1714 = vmatpush1.msra.mxu0 0.0
        %1715 = vmatprep.subr.mxu0 0.0
        %1716 = vmatpush1.msra.mxu0 0.0
        %1717 = vmatprep.subr.mxu0 0.0
        %1718 = vmatpush1.msra.mxu0 0.0
        %1719 = vmatprep.mubr.f32.mxu0 0.0
        %1720 = vmatmul.mubr.f32.gmra.mrb[0].mxu0 %v1632
        %v1721 = vpop.f32.mrb[0].mxu0
        %v1722 = vadd.f32 0.0, %v1721
        %v1723 = vpop.f32.mrb[0].mxu0
        %1724 = vmatprep.mubr.f32.mxu0 0.0
        %1725 = vmatmul.mubr.f32.gmra.mrb[0].mxu0 %v1635
        %v1726 = vpop.f32.mrb[0].mxu0
        %v1727 = vadd.f32 0.0, %v1726
        %v1728 = vpop.f32.mrb[0].mxu0
        %1729 = vmatprep.mubr.f32.mxu0 0.0
        %1730 = vmatmul.mubr.f32.gmra.mrb[0].mxu0 %v1638
        %v1731 = vpop.f32.mrb[0].mxu0
        %v1732 = vadd.f32 0.0, %v1731
        %v1733 = vpop.f32.mrb[0].mxu0
        %1734 = vmatprep.mubr.f32.mxu0 0.0
        %1735 = vmatmul.mubr.f32.gmra.mrb[0].mxu0 %v1641
        %v1736 = vpop.f32.mrb[0].mxu0
        %v1737 = vadd.f32 0.0, %v1736
        %v1738 = vpop.f32.mrb[0].mxu0
        %1739 = vmatprep.mubr.f32.mxu0 0.0
        %1740 = vmatmul.mubr.f32.gmra.mrb[0].mxu0 %v1644
        %v1741 = vpop.f32.mrb[0].mxu0
        %v1742 = vadd.f32 0.0, %v1741
        %v1743 = vpop.f32.mrb[0].mxu0
        %1744 = vmatprep.mubr.f32.mxu0 0.0
        %1745 = vmatmul.mubr.f32.gmra.mrb[0].mxu0 %v1647
        %v1746 = vpop.f32.mrb[0].mxu0
        %v1747 = vadd.f32 0.0, %v1746
        %v1748 = vpop.f32.mrb[0].mxu0
        %1749 = vmatprep.mubr.f32.mxu0 0.0
        %1750 = vmatmul.mubr.f32.gmra.mrb[0].mxu0 %v1650
        %v1751 = vpop.f32.mrb[0].mxu0
        %v1752 = vadd.f32 0.0, %v1751
        %v1753 = vpop.f32.mrb[0].mxu0
        %1754 = vmatprep.mubr.f32.mxu0 0.0
        %1755 = vmatmul.mubr.f32.gmra.mrb[0].mxu0 %v1653
        %v1756 = vpop.f32.mrb[0].mxu0
        %v1757 = vadd.f32 0.0, %v1756
        %v1758 = vpop.f32.mrb[0].mxu0
        %1759 = vdwg.mxu0
        %v1760 = vadd.f32 %v1572, %v1722
        %v1761 = vadd.f32 %v1577, %v1727
        %v1762 = vadd.f32 %v1582, %v1732
        %v1763 = vadd.f32 %v1587, %v1737
        %v1764 = vadd.f32 %v1592, %v1742
        %v1765 = vadd.f32 %v1597, %v1747
        %v1766 = vadd.f32 %v1602, %v1752
        %v1767 = vadd.f32 %v1607, %v1757
        %v1768 = vld [vmem:[%s8] sm:$0xff]
        %v1769 = vld [vmem:[%s8 + $0x8] sm:$0xff]
        %v1770 = vld [vmem:[%s8 + $0x10] sm:$0xff]
        %v1771 = vld [vmem:[%s8 + $0x18] sm:$0xff]
        %v1772 = vld [vmem:[%s8 + $0x20] sm:$0xff]
        %v1773 = vld [vmem:[%s8 + $0x28] sm:$0xff]
        %v1774 = vld [vmem:[%s8 + $0x30] sm:$0xff]
        %v1775 = vld [vmem:[%s8 + $0x38] sm:$0xff]
        %1777 = vset.pattern.permute.xlu0 0
        %1778 = vperm.xlu0 %1777, %v1768
        %v1779 = vpop.permute.xlu0 %1778
        %1782 = vset.pattern.permute.xlu0 0
        %1783 = vperm.xlu0 %1782, %v1769
        %v1784 = vpop.permute.xlu0 %1783
        %1787 = vset.pattern.permute.xlu0 0
        %1788 = vperm.xlu0 %1787, %v1770
        %v1789 = vpop.permute.xlu0 %1788
        %1792 = vset.pattern.permute.xlu0 0
        %1793 = vperm.xlu0 %1792, %v1771
        %v1794 = vpop.permute.xlu0 %1793
        %1797 = vset.pattern.permute.xlu0 0
        %1798 = vperm.xlu0 %1797, %v1772
        %v1799 = vpop.permute.xlu0 %1798
        %1802 = vset.pattern.permute.xlu0 0
        %1803 = vperm.xlu0 %1802, %v1773
        %v1804 = vpop.permute.xlu0 %1803
        %1807 = vset.pattern.permute.xlu0 0
        %1808 = vperm.xlu0 %1807, %v1774
        %v1809 = vpop.permute.xlu0 %1808
        %1812 = vset.pattern.permute.xlu0 0
        %1813 = vperm.xlu0 %1812, %v1775
        %v1814 = vpop.permute.xlu0 %1813
        %v1816 = vadd.f32 %v1760, %v1779
        %v1817 = vadd.f32 %v1761, %v1784
        %v1818 = vadd.f32 %v1762, %v1789
        %v1819 = vadd.f32 %v1763, %v1794
        %v1820 = vadd.f32 %v1764, %v1799
        %v1821 = vadd.f32 %v1765, %v1804
        %v1822 = vadd.f32 %v1766, %v1809
        %v1823 = vadd.f32 %v1767, %v1814
        %v1824 = vmul.f32 %v1816, 0.5
        %v1825 = vmul.f32 %v1817, 0.5
        %v1826 = vmul.f32 %v1818, 0.5
        %v1827 = vmul.f32 %v1819, 0.5
        %v1828 = vmul.f32 %v1820, 0.5
        %v1829 = vmul.f32 %v1821, 0.5
        %v1830 = vmul.f32 %v1822, 0.5
        %v1831 = vmul.f32 %v1823, 0.5
        %v1832 = vmul.f32 %v1816, 0.044715
        %v1833 = vmul.f32 %v1817, 0.044715
        %v1834 = vmul.f32 %v1818, 0.044715
        %v1835 = vmul.f32 %v1819, 0.044715
        %v1836 = vmul.f32 %v1820, 0.044715
        %v1837 = vmul.f32 %v1821, 0.044715
        %v1838 = vmul.f32 %v1822, 0.044715
        %v1839 = vmul.f32 %v1823, 0.044715
        %v1840 = vmul.f32 %v1832, %v1816
        %v1841 = vmul.f32 %v1833, %v1817
        %v1842 = vmul.f32 %v1834, %v1818
        %v1843 = vmul.f32 %v1835, %v1819
        %v1844 = vmul.f32 %v1836, %v1820
        %v1845 = vmul.f32 %v1837, %v1821
        %v1846 = vmul.f32 %v1838, %v1822
        %v1847 = vmul.f32 %v1839, %v1823
        %v1848 = vmul.f32 %v1840, %v1816
        %v1849 = vmul.f32 %v1841, %v1817
        %v1850 = vmul.f32 %v1842, %v1818
        %v1851 = vmul.f32 %v1843, %v1819
        %v1852 = vmul.f32 %v1844, %v1820
        %v1853 = vmul.f32 %v1845, %v1821
        %v1854 = vmul.f32 %v1846, %v1822
        %v1855 = vmul.f32 %v1847, %v1823
        %v1856 = vadd.f32 %v1816, %v1848
        %v1857 = vadd.f32 %v1817, %v1849
        %v1858 = vadd.f32 %v1818, %v1850
        %v1859 = vadd.f32 %v1819, %v1851
        %v1860 = vadd.f32 %v1820, %v1852
        %v1861 = vadd.f32 %v1821, %v1853
        %v1862 = vadd.f32 %v1822, %v1854
        %v1863 = vadd.f32 %v1823, %v1855
        %v1864 = vmul.f32 %v1856, 0.7978846
        %v1865 = vmul.f32 %v1857, 0.7978846
        %v1866 = vmul.f32 %v1858, 0.7978846
        %v1867 = vmul.f32 %v1859, 0.7978846
        %v1868 = vmul.f32 %v1860, 0.7978846
        %v1869 = vmul.f32 %v1861, 0.7978846
        %v1870 = vmul.f32 %v1862, 0.7978846
        %v1871 = vmul.f32 %v1863, 0.7978846
        %v1872 = vtanh.pop %v1864
        %v1873 = vtanh.pop %v1865
        %v1874 = vtanh.pop %v1866
        %v1875 = vtanh.pop %v1867
        %v1876 = vtanh.pop %v1868
        %v1877 = vtanh.pop %v1869
        %v1878 = vtanh.pop %v1870
        %v1879 = vtanh.pop %v1871
        %v1880 = vadd.f32 %v1872, 1.0
        %v1881 = vadd.f32 %v1873, 1.0
        %v1882 = vadd.f32 %v1874, 1.0
        %v1883 = vadd.f32 %v1875, 1.0
        %v1884 = vadd.f32 %v1876, 1.0
        %v1885 = vadd.f32 %v1877, 1.0
        %v1886 = vadd.f32 %v1878, 1.0
        %v1887 = vadd.f32 %v1879, 1.0
        %v1888 = vmul.f32 %v1824, %v1880
        %v1889 = vmul.f32 %v1825, %v1881
        %v1890 = vmul.f32 %v1826, %v1882
        %v1891 = vmul.f32 %v1827, %v1883
        %v1892 = vmul.f32 %v1828, %v1884
        %v1893 = vmul.f32 %v1829, %v1885
        %v1894 = vmul.f32 %v1830, %v1886
        %v1895 = vmul.f32 %v1831, %v1887
        %v1896 = vld [vmem:[%s9] sm:$0xff]
        %v1897 = vld [vmem:[%s9 + $0x8] sm:$0xff]
        %v1898 = vld [vmem:[%s10] sm:$0xff]
        %v1899 = vld [vmem:[%s10 + $0x8] sm:$0xff]
        %1901 = vset.pattern.permute.xlu0 0
        %1902 = vperm.xlu0 %1901, %v1898
        %v1903 = vpop.permute.xlu0 %1902
        %1906 = vset.pattern.permute.xlu0 0
        %1907 = vperm.xlu0 %1906, %v1899
        %v1908 = vpop.permute.xlu0 %1907
        %vm1910 = vcmask 523264
        %v1912 = vsel %vm1910, %v1896, 0
        %v1915 = vsel %vm1910, %v1897, 0
        %1917 = vmatprep.subr.mxu0 0.0
        %1918 = vmatpush1.msra.mxu0 %v1888
        %1919 = vmatprep.subr.mxu0 0.0
        %1920 = vmatpush1.msra.mxu0 %v1889
        %1921 = vmatprep.subr.mxu0 0.0
        %1922 = vmatpush1.msra.mxu0 %v1890
        %1923 = vmatprep.subr.mxu0 0.0
        %1924 = vmatpush1.msra.mxu0 %v1891
        %1925 = vmatprep.subr.mxu0 0.0
        %1926 = vmatpush1.msra.mxu0 %v1892
        %1927 = vmatprep.subr.mxu0 0.0
        %1928 = vmatpush1.msra.mxu0 %v1893
        %1929 = vmatprep.subr.mxu0 0.0
        %1930 = vmatpush1.msra.mxu0 %v1894
        %1931 = vmatprep.subr.mxu0 0.0
        %1932 = vmatpush1.msra.mxu0 %v1895
        %1933 = vmatprep.subr.mxu0 0.0
        %1934 = vmatpush1.msra.mxu0 0.0
        %1935 = vmatprep.subr.mxu0 0.0
        %1936 = vmatpush1.msra.mxu0 0.0
        %1937 = vmatprep.subr.mxu0 0.0
        %1938 = vmatpush1.msra.mxu0 0.0
        %1939 = vmatprep.subr.mxu0 0.0
        %1940 = vmatpush1.msra.mxu0 0.0
        %1941 = vmatprep.subr.mxu0 0.0
        %1942 = vmatpush1.msra.mxu0 0.0
        %1943 = vmatprep.subr.mxu0 0.0
        %1944 = vmatpush1.msra.mxu0 0.0
        %1945 = vmatprep.subr.mxu0 0.0
        %1946 = vmatpush1.msra.mxu0 0.0
        %1947 = vmatprep.subr.mxu0 0.0
        %1948 = vmatpush1.msra.mxu0 0.0
        %1949 = vmatprep.subr.mxu0 0.0
        %1950 = vmatpush1.msra.mxu0 0.0
        %1951 = vmatprep.subr.mxu0 0.0
        %1952 = vmatpush1.msra.mxu0 0.0
        %1953 = vmatprep.subr.mxu0 0.0
        %1954 = vmatpush1.msra.mxu0 0.0
        %1955 = vmatprep.subr.mxu0 0.0
        %1956 = vmatpush1.msra.mxu0 0.0
        %1957 = vmatprep.subr.mxu0 0.0
        %1958 = vmatpush1.msra.mxu0 0.0
        %1959 = vmatprep.subr.mxu0 0.0
        %1960 = vmatpush1.msra.mxu0 0.0
        %1961 = vmatprep.subr.mxu0 0.0
        %1962 = vmatpush1.msra.mxu0 0.0
        %1963 = vmatprep.subr.mxu0 0.0
        %1964 = vmatpush1.msra.mxu0 0.0
        %1965 = vmatprep.subr.mxu0 0.0
        %1966 = vmatpush1.msra.mxu0 0.0
        %1967 = vmatprep.subr.mxu0 0.0
        %1968 = vmatpush1.msra.mxu0 0.0
        %1969 = vmatprep.subr.mxu0 0.0
        %1970 = vmatpush1.msra.mxu0 0.0
        %1971 = vmatprep.subr.mxu0 0.0
        %1972 = vmatpush1.msra.mxu0 0.0
        %1973 = vmatprep.subr.mxu0 0.0
        %1974 = vmatpush1.msra.mxu0 0.0
        %1975 = vmatprep.subr.mxu0 0.0
        %1976 = vmatpush1.msra.mxu0 0.0
        %1977 = vmatprep.subr.mxu0 0.0
        %1978 = vmatpush1.msra.mxu0 0.0
        %1979 = vmatprep.subr.mxu0 0.0
        %1980 = vmatpush1.msra.mxu0 0.0
        %1981 = vmatprep.mubr.f32.mxu0 0.0
        %1982 = vmatmul.mubr.f32.gmra.mrb[0].mxu0 %v1912
        %v1983 = vpop.f32.mrb[0].mxu0
        %v1984 = vadd.f32 %v1903, %v1983
        %v1985 = vpop.f32.mrb[0].mxu0
        %1986 = vmatprep.mubr.f32.mxu0 0.0
        %1987 = vmatmul.mubr.f32.gmra.mrb[0].mxu0 %v1915
        %v1988 = vpop.f32.mrb[0].mxu0
        %v1989 = vadd.f32 %v1908, %v1988
        %v1990 = vpop.f32.mrb[0].mxu0
        %1991 = vdwg.mxu0
        %1992 = vst.msk [vmem:[%s377] sm:$0xff] %vm1910, %v1984
        %1993 = vst.msk [vmem:[%s377 + $0x8] sm:$0xff] %vm1910, %v1989
        %s1994 = sand.u32 %s269, 1
        %s1995 = scalar_lea.sflag [#allocation3], %s1994
        %s1996 = sand.u32 %s269, 1
        %s1997 = smul.addr %s1996, 16
        %s1998 = scalar_lea.vmem [#allocation2], %s1997
        // Predicated region
        $region65: #{tpu_custom_call.1} parent=63 // pred_check
          %p1999 = pneg %p279
        $region66: #{tpu_custom_call.1} parent=63 // pred_check_branch
          %2001 = sbr.rel (%p1999) target = $region68
        $region67: #{tpu_custom_call.1} parent=63 // pred_region
          %s2003 = ssub.s32 256, 256
          %2004 = vsyncadd %s1995, %s2003
          %s2005 = smul.addr %s25, 2
          %s2006 = smul.addr %s2005, 128
          %s2007 = scalar_lea.hbm %s11, %s2006
          %s2008 = sshll.u32 %s1998, 4
          %s2009 = int_to_ptr.vmem [resolvable:$true] %s2008
          %2014 = dma.vmem_to_hbm [thread:$0]  %s2009, 256, %s2007, %s1995, 128, 128, 8
        $region68: #{tpu_custom_call.1} parent=63 // pred_fallthru
          _
      $region64: #{tpu_custom_call.1} parent=5 // pred_fallthru
        _
      %p2015 = scmp.le.s32.totalorder 2, %s20
      // Predicated region
      $region69: #{tpu_custom_call.1} parent=5 // pred_check
        %p2016 = pneg %p2015
      $region70: #{tpu_custom_call.1} parent=5 // pred_check_branch
        %2018 = sbr.rel (%p2016) target = $region72
      $region71: #{tpu_custom_call.1} parent=5 // pred_region
        %s2019 = ssub.s32 %s20, 2
        // Predicated region
        $region73: #{tpu_custom_call.1} parent=71 // pred_check
          %p2020 = pneg %p285
        $region74: #{tpu_custom_call.1} parent=71 // pred_check_branch
          %2022 = sbr.rel (%p2020) target = $region76
        $region75: #{tpu_custom_call.1} parent=71 // pred_region
          %s2023 = sand.u32 %s270, 1
          %s2024 = scalar_lea.sflag [#allocation3], %s2023
          %s2025 = sand.u32 %s270, 1
          %s2026 = smul.addr %s2025, 16
          %s2027 = scalar_lea.vmem [#allocation2], %s2026
          %2028 = dma.done %s2024, 256
        $region76: #{tpu_custom_call.1} parent=71 // pred_fallthru
          _
      $region72: #{tpu_custom_call.1} parent=5 // pred_fallthru
        _
    $region6: #{tpu_custom_call.1} parent=1 // loop_footer
      %s24 = sadd.s32 1, %s20
    $region7: #{tpu_custom_call.1} parent=1 // loop_footer_branch
      %19 = sbr.rel target = $region3
    $region8: #{tpu_custom_call.1} parent=1 // loop_exit
      _
    %2029 = vsyncpa [#allocation3], 1
    %s2030 = scalar_lea.sflag [#allocation3], 1
    %2031 = vsyncpa %s2030, 1

</llo_original>
